<compile_context>
chip_gen: v6e
topology: v6e:2x2x1
jax: 0.10.0
libtpu: 0.0.40
codegen_flags: <defaults>
</compile_context>

<pallas_src>
import functools
import math

import jax
import jax.numpy as jnp
from jax import lax
from jax.experimental import pallas as pl
from jax.experimental.pallas import tpu as pltpu


def _attention_block_kernel(x_ref, gamma_ref, wqkv_ref, bqkv_ref, wproj_ref,
                            bproj_ref, o_ref, qkv_ref, attn_ref, *, hw):
    # x_ref block: (1, C, N) with N = F * HW, channels-major (straight from HBM).
    c = x_ref.shape[1]
    n = x_ref.shape[2]
    f = n // hw

    xt = x_ref[0]                                                    # (C, N) f32

    # ---- RMS_norm over channels (f32): F.normalize(dim=C) * sqrt(C) * gamma ----
    # Channels live on sublanes -> cross-sublane reduce, result broadcast over lanes.
    l2 = jnp.sqrt(jnp.sum(xt * xt, axis=0, keepdims=True))           # (1, N)
    xn = xt * (math.sqrt(c) / jnp.maximum(l2, 1e-12)) * gamma_ref[...]
    xn_bf = xn.astype(jnp.bfloat16)

    # ---- fused to_qkv, channels-major: (3C, N) = W_qkv^T @ xn  (single NN MXU pass) ----
    # The 1/sqrt(C) attention scale is pre-folded into the q rows of W/b (wrapper).
    qkv = jnp.dot(wqkv_ref[...], xn_bf,
                  preferred_element_type=jnp.float32) + bqkv_ref[...]
    qkv_ref[...] = qkv.astype(jnp.bfloat16)                          # bf16 scratch

    # ---- per-frame single-head attention on (HW, HW) scores tiles ----
    def frame(start):
        qf = qkv_ref[0 * c:1 * c, pl.ds(start, hw)]                  # (C, HW) bf16
        kf = qkv_ref[1 * c:2 * c, pl.ds(start, hw)]
        vf = qkv_ref[2 * c:3 * c, pl.ds(start, hw)]
        # scores[q, k] = sum_c qf[c, q] * kf[c, k]  (TN form; scale already in q)
        scores = lax.dot_general(qf, kf, (((0,), (0,)), ((), ())),
                                 preferred_element_type=jnp.float32)  # (HW, HW) f32
        m = jnp.max(scores, axis=-1, keepdims=True)
        p = jnp.exp(scores - m)                                       # f32, EUP
        denom = jnp.sum(p, axis=-1, keepdims=True)
        attn = p * pl.reciprocal(denom, approx=True)                  # EUP reciprocal
        # out^T[c, q] = sum_k vf[c, k] * attn[q, k]  (NT form, stays channels-major)
        out_t = lax.dot_general(vf, attn.astype(jnp.bfloat16),
                                (((1,), (1,)), ((), ())),
                                preferred_element_type=jnp.float32)   # (C, HW)
        attn_ref[:, pl.ds(start, hw)] = out_t.astype(jnp.bfloat16)

    if f == 1:
        frame(0)
    elif hw % 128 == 0:
        # fori_loop bounds live ranges of the (HW, HW) temporaries across frames.
        def body(fi, carry):
            frame(pl.multiple_of(fi * hw, hw))
            return carry
        lax.fori_loop(0, f, body, 0, unroll=2)
    else:
        # TODO(synk): non-128-aligned HW -> static slices (correct, may relayout).
        for fi in range(f):
            frame(fi * hw)

    # ---- proj (all F*HW tokens at once, channels-major NN) + residual (f32) ----
    proj = jnp.dot(wproj_ref[...], attn_ref[...],
                   preferred_element_type=jnp.float32) + bproj_ref[...]
    o_ref[0] = (proj + xt).astype(o_ref.dtype)                       # lane-dense store


def _vmem_config():
    """Generation-aware (per-core VMEM budget for F selection, scoped vmem limit)."""
    cap = None
    try:
        cap = getattr(pltpu.get_tpu_info(), "vmem_capacity_bytes", None)
    except Exception:
        cap = None
    if cap is not None and cap >= (96 << 20):
        # 128 MiB parts (v5e / v6e): use most of the chip.
        return 64 << 20, 100 << 20
    # 64 MiB parts (v7x) or unknown: stay conservative to avoid spills/OOM.
    return 20 << 20, 48 << 20


def _choose_frames_per_block(b, t, hw, c, budget_bytes):
    """Largest F dividing t such that (a) F*HW is lane-aligned (%128==0) or the
    full extent, (b) the per-step VMEM footprint fits the budget, and (c) the
    grid keeps >= 4 steps when possible (2 per TensorCore on v7x + pipelining)."""
    def footprint(f):
        n = f * hw
        io = 2 * (2 * n * c * 4)                     # double-buffered f32 in/out blocks
        scratch = (3 * n * c + n * c) * 2            # qkv + attn bf16 scratches
        temps = 5 * n * c * 4 + 4 * n * c * 2        # x/xn/qkv/proj f32 + bf16 copies
        temps += 3 * hw * hw * 4                     # scores / probs / attn (one frame)
        weights = 2 * (4 * c * c * 2) + 8 * c * 4    # double-buffered weights + biases
        return io + scratch + temps + weights

    candidates = [f for f in range(1, t + 1)
                  if t % f == 0 and (f == t or (f * hw) % 128 == 0)]
    best = candidates[0]                             # smallest valid tiling always works
    for f in candidates:
        if footprint(f) > budget_bytes:
            continue
        if f > best and b * (t // f) < 4:            # don't trade away pipelining/megacore
            continue
        best = max(best, f)
    return best


def attention_block(x, gamma, w_qkv, b_qkv, w_proj, b_proj):
    """x: (b, c, t, h, w) float32.  Conv-1x1 weights are given as (in, out)
    matrices, i.e. torch_weight[:, :, 0, 0].T.  Returns x.shape / x.dtype."""
    b, c, t, h, w = x.shape
    hw = h * w
    budget_bytes, vmem_limit = _vmem_config()
    f = _choose_frames_per_block(b, t, hw, c, budget_bytes)
    n = f * hw
    n_chunks = t // f

    # Free reshape only (merge trailing contiguous dims): no HBM transpose pass.
    x_flat = x.reshape(b, c, t * hw)

    # Channels-major parameter prep (one-time, tiny): weights become (out, in),
    # biases/gamma become column vectors; the 1/sqrt(C) attention scale is
    # folded into the q rows of W_qkv / b_qkv.
    inv_sqrt_c = 1.0 / math.sqrt(c)
    qkv_scale = jnp.concatenate(
        [jnp.full((c,), inv_sqrt_c, jnp.float32), jnp.ones((2 * c,), jnp.float32)])
    wqkv_t = (w_qkv * qkv_scale[None, :]).T.astype(jnp.bfloat16)      # (3C, C)
    bqkv = (b_qkv * qkv_scale).reshape(3 * c, 1).astype(jnp.float32)  # (3C, 1)
    wproj_t = w_proj.T.astype(jnp.bfloat16)                           # (C, C)
    bproj = b_proj.reshape(c, 1).astype(jnp.float32)                  # (C, 1)
    gamma2 = gamma.reshape(c, 1).astype(jnp.float32)                  # (C, 1)

    cost = pl.CostEstimate(
        flops=b * t * (8 * hw * c * c + 4 * hw * hw * c),
        transcendentals=b * t * hw * hw,
        bytes_accessed=2 * b * t * hw * c * 4 + 4 * c * c * 2 + 8 * c * 4,
    )

    rep = lambda i, j: (0, 0)   # broadcast blocks (weights / biases / gamma)

    out_flat = pl.pallas_call(
        functools.partial(_attention_block_kernel, hw=hw),
        out_shape=jax.ShapeDtypeStruct((b, c, t * hw), jnp.float32),
        grid_spec=pltpu.PrefetchScalarGridSpec(
            num_scalar_prefetch=0,
            grid=(b, n_chunks),
            in_specs=[
                pl.BlockSpec((1, c, n), lambda i, j: (i, 0, j)),   # x (channels-major)
                pl.BlockSpec((c, 1), rep),                         # gamma
                pl.BlockSpec((3 * c, c), rep),                     # W_qkv^T (q pre-scaled)
                pl.BlockSpec((3 * c, 1), rep),                     # b_qkv  (q pre-scaled)
                pl.BlockSpec((c, c), rep),                         # W_proj^T
                pl.BlockSpec((c, 1), rep),                         # b_proj
            ],
            out_specs=pl.BlockSpec((1, c, n), lambda i, j: (i, 0, j)),
            scratch_shapes=[
                pltpu.VMEM((3 * c, n), jnp.bfloat16),              # qkv, channels-major
                pltpu.VMEM((c, n), jnp.bfloat16),                  # attention output
            ],
        ),
        compiler_params=pltpu.CompilerParams(
            dimension_semantics=("parallel", "parallel"),
            vmem_limit_bytes=vmem_limit,
        ),
        cost_estimate=cost,
    )(x_flat, gamma2, wqkv_t, bqkv, wproj_t, bproj)

    # Free reshape (split trailing dim) back to NCTHW.
    return out_flat.reshape(b, c, t, h, w)


def _reference(x, gamma, w_qkv, b_qkv, w_proj, b_proj):
    """Plain-JAX f32 reference of the same forward pass (correctness check)."""
    b, c, t, h, w = x.shape
    xt = jnp.transpose(x, (0, 2, 3, 4, 1)).reshape(b * t, h * w, c)
    l2 = jnp.sqrt(jnp.sum(xt * xt, axis=-1, keepdims=True))
    xn = xt / jnp.maximum(l2, 1e-12) * math.sqrt(c) * gamma.reshape(1, 1, c)
    qkv = jnp.einsum("nsc,cd->nsd", xn, w_qkv) + b_qkv.reshape(1, 1, 3 * c)
    q, k, v = qkv[..., :c], qkv[..., c:2 * c], qkv[..., 2 * c:]
    scores = jnp.einsum("nqc,nkc->nqk", q, k) / math.sqrt(c)
    attn = jax.nn.softmax(scores, axis=-1)
    out = jnp.einsum("nqk,nkc->nqc", attn, v)
    proj = jnp.einsum("nsc,cd->nsd", out, w_proj) + b_proj.reshape(1, 1, c)
    res = proj + xt
    return res.reshape(b, t, h, w, c).transpose(0, 4, 1, 2, 3)


if __name__ == "__main__":
    # Small shapes consistent with the module's forward.
    # hw = 16*16 = 256 (lane-aligned); T=4 exercises the multi-frame fori_loop path.
    B, C, T, H, W = 2, 32, 4, 16, 16

    key = jax.random.PRNGKey(0)
    kx, kg, kqw, kqb, kpw, kpb = jax.random.split(key, 6)

    x = jax.random.normal(kx, (B, C, T, H, W), dtype=jnp.float32)

    # Parameters (deterministic). Conv2d 1x1 weights stored as (in, out)
    # matrices, i.e. torch_weight[:, :, 0, 0].T.
    gamma = 1.0 + 0.1 * jax.random.normal(kg, (C,), jnp.float32)     # RMS_norm.gamma
    w_qkv = jax.random.normal(kqw, (C, 3 * C), jnp.float32) * 0.05   # to_qkv.weight
    b_qkv = jax.random.normal(kqb, (3 * C,), jnp.float32) * 0.05     # to_qkv.bias
    # NOTE: the module zero-inits proj.weight; small nonzero values are used so
    # the projection matmul is actually exercised (forward semantics unchanged).
    w_proj = jax.random.normal(kpw, (C, C), jnp.float32) * 0.05      # proj.weight
    b_proj = jax.random.normal(kpb, (C,), jnp.float32) * 0.05        # proj.bias

    out = attention_block(x, gamma, w_qkv, b_qkv, w_proj, b_proj)
    out = jax.block_until_ready(out)

    ref = _reference(x, gamma, w_qkv, b_qkv, w_proj, b_proj)
    assert out.shape == x.shape and out.dtype == x.dtype
    err = float(jnp.max(jnp.abs(out - ref)))
    # bf16 matmul operands + approx softmax reciprocal => relaxed tolerance.
    assert err < 3e-2, f"mismatch vs reference: max abs err = {err}"

    print("KERNEL_OK")
</pallas_src>

<mosaic_0001>
module attributes {stable_mosaic.version = 11 : i64} {
  func.func @_attention_block_kernel(%arg0: i32, %arg1: i32, %arg2: memref<1x32x512xf32, #tpu.memory_space<vmem>>, %arg3: memref<32x1xf32, #tpu.memory_space<vmem>>, %arg4: memref<96x32xbf16, #tpu.memory_space<vmem>>, %arg5: memref<96x1xf32, #tpu.memory_space<vmem>>, %arg6: memref<32x32xbf16, #tpu.memory_space<vmem>>, %arg7: memref<32x1xf32, #tpu.memory_space<vmem>>, %arg8: memref<1x32x512xf32, #tpu.memory_space<vmem>>, %arg9: memref<96x512xbf16, #tpu.memory_space<vmem>>, %arg10: memref<32x512xbf16, #tpu.memory_space<vmem>>) attributes {dimension_semantics = [#tpu.dimension_semantics<parallel>, #tpu.dimension_semantics<parallel>], iteration_bounds = array<i64: 2, 2>, scalar_prefetch = 0 : i64, scratch_operands = 2 : i64, tpu.core_type = #tpu.core_type<tc>, window_params = [{transform_indices = @transform_0, window_bounds = array<i64: 1, 32, 512>}, {pipeline_mode = #tpu.pipeline_mode<synchronous>, transform_indices = @transform_1, window_bounds = array<i64: 32, 1>}, {pipeline_mode = #tpu.pipeline_mode<synchronous>, transform_indices = @transform_2, window_bounds = array<i64: 96, 32>}, {pipeline_mode = #tpu.pipeline_mode<synchronous>, transform_indices = @transform_3, window_bounds = array<i64: 96, 1>}, {pipeline_mode = #tpu.pipeline_mode<synchronous>, transform_indices = @transform_4, window_bounds = array<i64: 32, 32>}, {pipeline_mode = #tpu.pipeline_mode<synchronous>, transform_indices = @transform_5, window_bounds = array<i64: 32, 1>}, {transform_indices = @transform_6, window_bounds = array<i64: 1, 32, 512>}]} {
    %c0 = arith.constant 0 : index
    %c0_0 = arith.constant 0 : index
    %c0_1 = arith.constant 0 : index
    %0 = vector.load %arg2[%c0, %c0_0, %c0_1] : memref<1x32x512xf32, #tpu.memory_space<vmem>>, vector<1x32x512xf32>
    %1 = vector.shape_cast %0 : vector<1x32x512xf32> to vector<32x512xf32>
    %2 = arith.mulf %1, %1 : vector<32x512xf32>
    %cst = arith.constant dense<0.000000e+00> : vector<512xf32>
    %3 = vector.multi_reduction <add>, %2, %cst [0] : vector<32x512xf32> to vector<512xf32>
    %4 = vector.shape_cast %3 : vector<512xf32> to vector<1x512xf32>
    %5 = math.sqrt %4 : vector<1x512xf32>
    %cst_2 = arith.constant 9.99999996E-13 : f32
    %6 = vector.broadcast %cst_2 : f32 to vector<1x512xf32>
    %7 = arith.maximumf %5, %6 : vector<1x512xf32>
    %cst_3 = arith.constant 5.65685415 : f32
    %8 = vector.broadcast %cst_3 : f32 to vector<1x512xf32>
    %9 = arith.divf %8, %7 : vector<1x512xf32>
    %10 = vector.broadcast %9 : vector<1x512xf32> to vector<32x512xf32>
    %11 = arith.mulf %1, %10 : vector<32x512xf32>
    %c0_4 = arith.constant 0 : index
    %c0_5 = arith.constant 0 : index
    %12 = vector.load %arg3[%c0_4, %c0_5] : memref<32x1xf32, #tpu.memory_space<vmem>>, vector<32x1xf32>
    %13 = vector.broadcast %12 : vector<32x1xf32> to vector<32x512xf32>
    %14 = arith.mulf %11, %13 : vector<32x512xf32>
    %15 = arith.truncf %14 : vector<32x512xf32> to vector<32x512xbf16>
    %c0_6 = arith.constant 0 : index
    %c0_7 = arith.constant 0 : index
    %16 = vector.load %arg4[%c0_6, %c0_7] : memref<96x32xbf16, #tpu.memory_space<vmem>>, vector<96x32xbf16>
    %cst_8 = arith.constant dense<0.000000e+00> : vector<96x512xf32>
    %17 = tpu.matmul %16, %15, %cst_8 {dimension_numbers = #tpu.dot_dimension_numbers<[1], [0], [0], [1], [0, 0, 1, 1], [], []>} : vector<96x32xbf16>, vector<32x512xbf16>, vector<96x512xf32> -> vector<96x512xf32>
    %c0_9 = arith.constant 0 : index
    %c0_10 = arith.constant 0 : index
    %18 = vector.load %arg5[%c0_9, %c0_10] : memref<96x1xf32, #tpu.memory_space<vmem>>, vector<96x1xf32>
    %19 = vector.broadcast %18 : vector<96x1xf32> to vector<96x512xf32>
    %20 = arith.addf %17, %19 : vector<96x512xf32>
    %21 = arith.truncf %20 : vector<96x512xf32> to vector<96x512xbf16>
    %c0_11 = arith.constant 0 : index
    %c0_12 = arith.constant 0 : index
    %22 = vector.load %arg9[%c0_11, %c0_12] : memref<96x512xbf16, #tpu.memory_space<vmem>>, vector<96x512xbf16>
    tpu.vector_store %arg9[%c0_11, %c0_12], %21 {strides = array<i32>} : memref<96x512xbf16, #tpu.memory_space<vmem>>, vector<96x512xbf16>,
    %c0_i32 = arith.constant 0 : i32
    %c256_i32 = arith.constant 256 : i32
    %23 = arith.muli %c0_i32, %c256_i32 : i32
    %24 = tpu.assume_multiple %23, 256 : i32
    %c0_13 = arith.constant 0 : index
    %25 = arith.index_cast %24 : i32 to index
    %26 = vector.load %arg9[%c0_13, %25] : memref<96x512xbf16, #tpu.memory_space<vmem>>, vector<32x256xbf16>
    %c32 = arith.constant 32 : index
    %27 = arith.index_cast %24 : i32 to index
    %28 = vector.load %arg9[%c32, %27] : memref<96x512xbf16, #tpu.memory_space<vmem>>, vector<32x256xbf16>
    %c64 = arith.constant 64 : index
    %29 = arith.index_cast %24 : i32 to index
    %30 = vector.load %arg9[%c64, %29] : memref<96x512xbf16, #tpu.memory_space<vmem>>, vector<32x256xbf16>
    %cst_14 = arith.constant dense<0.000000e+00> : vector<256x256xf32>
    %31 = tpu.matmul %26, %28, %cst_14 {dimension_numbers = #tpu.dot_dimension_numbers<[0], [0], [1], [1], [0, 1, 1, 1], [], []>} : vector<32x256xbf16>, vector<32x256xbf16>, vector<256x256xf32> -> vector<256x256xf32>
    %cst_15 = arith.constant dense<0xFF800000> : vector<256xf32>
    %32 = vector.multi_reduction <maximumf>, %31, %cst_15 [1] : vector<256x256xf32> to vector<256xf32>
    %33 = vector.shape_cast %32 : vector<256xf32> to vector<256x1xf32>
    %34 = vector.broadcast %33 : vector<256x1xf32> to vector<256x256xf32>
    %35 = arith.subf %31, %34 : vector<256x256xf32>
    %36 = math.exp %35 : vector<256x256xf32>
    %cst_16 = arith.constant dense<0.000000e+00> : vector<256xf32>
    %37 = vector.multi_reduction <add>, %36, %cst_16 [1] : vector<256x256xf32> to vector<256xf32>
    %38 = vector.shape_cast %37 : vector<256xf32> to vector<256x1xf32>
    %39 = tpu.reciprocal %38 {approx = true} : vector<256x1xf32> -> vector<256x1xf32>
    %40 = vector.broadcast %39 : vector<256x1xf32> to vector<256x256xf32>
    %41 = arith.mulf %36, %40 : vector<256x256xf32>
    %42 = arith.truncf %41 : vector<256x256xf32> to vector<256x256xbf16>
    %cst_17 = arith.constant dense<0.000000e+00> : vector<32x256xf32>
    %43 = tpu.matmul %30, %42, %cst_17 {dimension_numbers = #tpu.dot_dimension_numbers<[1], [1], [0], [0], [0, 0, 1, 0], [], []>} : vector<32x256xbf16>, vector<256x256xbf16>, vector<32x256xf32> -> vector<32x256xf32>
    %44 = arith.truncf %43 : vector<32x256xf32> to vector<32x256xbf16>
    %c0_18 = arith.constant 0 : index
    %45 = arith.index_cast %24 : i32 to index
    %46 = vector.load %arg10[%c0_18, %45] : memref<32x512xbf16, #tpu.memory_space<vmem>>, vector<32x256xbf16>
    tpu.vector_store %arg10[%c0_18, %45], %44 {strides = array<i32>} : memref<32x512xbf16, #tpu.memory_space<vmem>>, vector<32x256xbf16>,
    %c1_i32 = arith.constant 1 : i32
    %c256_i32_19 = arith.constant 256 : i32
    %47 = arith.muli %c1_i32, %c256_i32_19 : i32
    %48 = tpu.assume_multiple %47, 256 : i32
    %c0_20 = arith.constant 0 : index
    %49 = arith.index_cast %48 : i32 to index
    %50 = vector.load %arg9[%c0_20, %49] : memref<96x512xbf16, #tpu.memory_space<vmem>>, vector<32x256xbf16>
    %c32_21 = arith.constant 32 : index
    %51 = arith.index_cast %48 : i32 to index
    %52 = vector.load %arg9[%c32_21, %51] : memref<96x512xbf16, #tpu.memory_space<vmem>>, vector<32x256xbf16>
    %c64_22 = arith.constant 64 : index
    %53 = arith.index_cast %48 : i32 to index
    %54 = vector.load %arg9[%c64_22, %53] : memref<96x512xbf16, #tpu.memory_space<vmem>>, vector<32x256xbf16>
    %cst_23 = arith.constant dense<0.000000e+00> : vector<256x256xf32>
    %55 = tpu.matmul %50, %52, %cst_23 {dimension_numbers = #tpu.dot_dimension_numbers<[0], [0], [1], [1], [0, 1, 1, 1], [], []>} : vector<32x256xbf16>, vector<32x256xbf16>, vector<256x256xf32> -> vector<256x256xf32>
    %cst_24 = arith.constant dense<0xFF800000> : vector<256xf32>
    %56 = vector.multi_reduction <maximumf>, %55, %cst_24 [1] : vector<256x256xf32> to vector<256xf32>
    %57 = vector.shape_cast %56 : vector<256xf32> to vector<256x1xf32>
    %58 = vector.broadcast %57 : vector<256x1xf32> to vector<256x256xf32>
    %59 = arith.subf %55, %58 : vector<256x256xf32>
    %60 = math.exp %59 : vector<256x256xf32>
    %cst_25 = arith.constant dense<0.000000e+00> : vector<256xf32>
    %61 = vector.multi_reduction <add>, %60, %cst_25 [1] : vector<256x256xf32> to vector<256xf32>
    %62 = vector.shape_cast %61 : vector<256xf32> to vector<256x1xf32>
    %63 = tpu.reciprocal %62 {approx = true} : vector<256x1xf32> -> vector<256x1xf32>
    %64 = vector.broadcast %63 : vector<256x1xf32> to vector<256x256xf32>
    %65 = arith.mulf %60, %64 : vector<256x256xf32>
    %66 = arith.truncf %65 : vector<256x256xf32> to vector<256x256xbf16>
    %cst_26 = arith.constant dense<0.000000e+00> : vector<32x256xf32>
    %67 = tpu.matmul %54, %66, %cst_26 {dimension_numbers = #tpu.dot_dimension_numbers<[1], [1], [0], [0], [0, 0, 1, 0], [], []>} : vector<32x256xbf16>, vector<256x256xbf16>, vector<32x256xf32> -> vector<32x256xf32>
    %68 = arith.truncf %67 : vector<32x256xf32> to vector<32x256xbf16>
    %c0_27 = arith.constant 0 : index
    %69 = arith.index_cast %48 : i32 to index
    %70 = vector.load %arg10[%c0_27, %69] : memref<32x512xbf16, #tpu.memory_space<vmem>>, vector<32x256xbf16>
    tpu.vector_store %arg10[%c0_27, %69], %68 {strides = array<i32>} : memref<32x512xbf16, #tpu.memory_space<vmem>>, vector<32x256xbf16>,
    %c2_i32 = arith.constant 2 : i32
    %c0_28 = arith.constant 0 : index
    %c0_29 = arith.constant 0 : index
    %71 = vector.load %arg6[%c0_28, %c0_29] : memref<32x32xbf16, #tpu.memory_space<vmem>>, vector<32x32xbf16>
    %c0_30 = arith.constant 0 : index
    %c0_31 = arith.constant 0 : index
    %72 = vector.load %arg10[%c0_30, %c0_31] : memref<32x512xbf16, #tpu.memory_space<vmem>>, vector<32x512xbf16>
    %cst_32 = arith.constant dense<0.000000e+00> : vector<32x512xf32>
    %73 = tpu.matmul %71, %72, %cst_32 {dimension_numbers = #tpu.dot_dimension_numbers<[1], [0], [0], [1], [0, 0, 1, 1], [], []>} : vector<32x32xbf16>, vector<32x512xbf16>, vector<32x512xf32> -> vector<32x512xf32>
    %c0_33 = arith.constant 0 : index
    %c0_34 = arith.constant 0 : index
    %74 = vector.load %arg7[%c0_33, %c0_34] : memref<32x1xf32, #tpu.memory_space<vmem>>, vector<32x1xf32>
    %75 = vector.broadcast %74 : vector<32x1xf32> to vector<32x512xf32>
    %76 = arith.addf %73, %75 : vector<32x512xf32>
    %77 = arith.addf %76, %1 : vector<32x512xf32>
    %c0_35 = arith.constant 0 : index
    %c0_36 = arith.constant 0 : index
    %c0_37 = arith.constant 0 : index
    %78 = vector.load %arg8[%c0_35, %c0_36, %c0_37] : memref<1x32x512xf32, #tpu.memory_space<vmem>>, vector<1x32x512xf32>
    %79 = vector.shape_cast %78 : vector<1x32x512xf32> to vector<32x512xf32>
    %80 = vector.shape_cast %77 : vector<32x512xf32> to vector<1x32x512xf32>
    tpu.vector_store %arg8[%c0_35, %c0_36, %c0_37], %80 {strides = array<i32>} : memref<1x32x512xf32, #tpu.memory_space<vmem>>, vector<1x32x512xf32>,
    return
  }
  func.func @transform_0(%arg0: i32, %arg1: i32) -> (i32, i32, i32) {
    %c0_i32 = arith.constant 0 : i32
    %c0_i32_0 = arith.constant 0 : i32
    return %arg0, %c0_i32, %arg1 : i32, i32, i32
  }
  func.func @transform_1(%arg0: i32, %arg1: i32) -> (i32, i32) {
    %c0_i32 = arith.constant 0 : i32
    %c0_i32_0 = arith.constant 0 : i32
    %c0_i32_1 = arith.constant 0 : i32
    return %c0_i32, %c0_i32_0 : i32, i32
  }
  func.func @transform_2(%arg0: i32, %arg1: i32) -> (i32, i32) {
    %c0_i32 = arith.constant 0 : i32
    %c0_i32_0 = arith.constant 0 : i32
    %c0_i32_1 = arith.constant 0 : i32
    return %c0_i32, %c0_i32_0 : i32, i32
  }
  func.func @transform_3(%arg0: i32, %arg1: i32) -> (i32, i32) {
    %c0_i32 = arith.constant 0 : i32
    %c0_i32_0 = arith.constant 0 : i32
    %c0_i32_1 = arith.constant 0 : i32
    return %c0_i32, %c0_i32_0 : i32, i32
  }
  func.func @transform_4(%arg0: i32, %arg1: i32) -> (i32, i32) {
    %c0_i32 = arith.constant 0 : i32
    %c0_i32_0 = arith.constant 0 : i32
    %c0_i32_1 = arith.constant 0 : i32
    return %c0_i32, %c0_i32_0 : i32, i32
  }
  func.func @transform_5(%arg0: i32, %arg1: i32) -> (i32, i32) {
    %c0_i32 = arith.constant 0 : i32
    %c0_i32_0 = arith.constant 0 : i32
    %c0_i32_1 = arith.constant 0 : i32
    return %c0_i32, %c0_i32_0 : i32, i32
  }
  func.func @transform_6(%arg0: i32, %arg1: i32) -> (i32, i32, i32) {
    %c0_i32 = arith.constant 0 : i32
    %c0_i32_0 = arith.constant 0 : i32
    return %arg0, %c0_i32, %arg1 : i32, i32, i32
  }
}

</mosaic_0001>

<llo_original>
// kernel: tpu_custom_call.1
$region0: #{tpu_custom_call.1}
  #allocation0 [shape = 'u32[]', space=smem, size = 0x4, offset = 0x4, fixed_abs, tag = 'smem constant byte address 0x4 - core index']
  #allocation1 [shape = 'u32[144,128]{1,0:T(1,128)}', space=vmem, size = 0x12000, scoped, tag = 'internal scratch']
  #allocation2 [shape = 'bf16[96,512]{1,0:T(8,128)(2,1)}', space=vmem, size = 0x18000, scoped, tag = 'scratch operand']
  #allocation3 [shape = 'bf16[32,512]{1,0:T(8,128)(2,1)}', space=vmem, size = 0x8000, scoped, tag = 'scratch operand']
  %s0 = inlined_call_operand.hbm [shape: f32[2,32,1024], index: 0, kind: input, shape index: {}]
  %s1 = inlined_call_operand.vmem [shape: f32[32,1], index: 1, kind: input, shape index: {}]
  %s2 = inlined_call_operand.vmem [shape: bf16[96,32], index: 2, kind: input, shape index: {}]
  %s3 = inlined_call_operand.vmem [shape: f32[96,1], index: 3, kind: input, shape index: {}]
  %s4 = inlined_call_operand.vmem [shape: bf16[32,32], index: 4, kind: input, shape index: {}]
  %s5 = inlined_call_operand.vmem [shape: f32[32,1], index: 5, kind: input, shape index: {}]
  %s6 = inlined_call_operand.hbm [shape: f32[2,32,1024], index: 6, kind: output, shape index: {}]
  %s7 = sld [smem:[#allocation0]]
  $region61: #{tpu_custom_call.1} parent=0
    _
  %s9 = ssub.s32 1, %s7
  %s10 = scalar_select 0, %s9, %s7
  $region1: #{tpu_custom_call.1} parent=0
    #allocation4 [shape = 'u8[131072]{0}', space=vmem, size = 0x20000, scoped, tag = 'input window, operand 0']
    #allocation5 [shape = 's32[2]{0}', space=sflag, size = 0x8, scoped, tag = 'scoped memory for tpu_custom_call.1']
    #allocation6 [shape = 's32[2]{0}', space=sflag, size = 0x8, scoped, tag = 'scoped memory for tpu_custom_call.1']
    #allocation7 [shape = 'u8[131072]{0}', space=vmem, size = 0x20000, scoped, tag = 'output window, operand 0']
    %11 = vsyncpa [#allocation5], 0
    %s12 = scalar_lea.sflag [#allocation5], 1
    %13 = vsyncpa %s12, 0
    %14 = vsyncpa [#allocation6], 0
    %s15 = scalar_lea.sflag [#allocation6], 1
    %16 = vsyncpa %s15, 0
    loop: start=0, step=1, limit=6
    $region2: #{tpu_custom_call.1} parent=1 // loop_pre_header
      _
    $region3: #{tpu_custom_call.1} parent=1 // loop_header
      %s18 = sphi 0, %s22
      %p19 = scmp.ge.s32.totalorder %s18, 6
      %s25 = sphi 0, %s37
      %s26 = sphi 0, %s33
      %s27 = sphi 0, %s25
      %s28 = sphi 0, %s26
      %s29 = sphi 0, %s27
      %s30 = sphi 0, %s28
      %s42 = sphi 0, %s44
      %s45 = sphi 0, %s42
      %s46 = sphi 0, %s45
      %s62 = sphi 0, %s46
      %s66 = sphi 0, %s66
      %s68 = sphi 0, %s66
      %s69 = sphi 0, %s68
      %s83 = sphi 0, %s69
      %s87 = sphi 0, %s87
      %s89 = sphi 0, %s87
      %s90 = sphi 0, %s89
      %s104 = sphi 0, %s90
      %s108 = sphi 0, %s108
      %s110 = sphi 0, %s108
      %s111 = sphi 0, %s110
      %s125 = sphi 0, %s111
      %s129 = sphi 0, %s129
      %s131 = sphi 0, %s129
      %s132 = sphi 0, %s131
      %s146 = sphi 0, %s132
      %s150 = sphi 0, %s150
      %s152 = sphi 0, %s150
      %s153 = sphi 0, %s152
      %s167 = sphi 0, %s153
      %s175 = sphi 0, %s177
      %s178 = sphi 0, %s175
      %s179 = sphi 0, %s178
      %s195 = sphi 0, %s179
    $region4: #{tpu_custom_call.1} parent=1 // loop_header_branch
      %21 = sbr.rel (%p19) target = $region8
    $region5: #{tpu_custom_call.1} parent=1 // loop_body
      %s23 = ssub.s32 %s18, 1
      %s24 = ssub.s32 %s18, 2
      %s31 = sadd.s32 1, %s26
      %p32 = scmp.ge.s32.totalorder %s31, 2
      %s33 = scalar_select %p32, 0, %s31
      %s34 = sadd.s32 1, %s25
      %s35 = scalar_select %p32, %s34, %s25
      %p36 = scmp.ge.s32.totalorder %s35, 2
      %s37 = scalar_select %p36, 0, %s35
      %s38 = ssub.s32 %s25, %s37
      %s39 = ssub.s32 %s26, %s33
      %s40 = sor.u32 %s38, %s39
      %p41 = scmp.eq.s32.totalorder %s40, 0
      %s43 = sadd.s32 %s42, 1
      %s44 = scalar_select %p41, %s42, %s43
      %p47 = pneg %p41
      %p48 = scmp.eq.s32.totalorder %s18, 3
      %p49 = por %p47, %p48
      %p50 = scmp.ne.s32.totalorder %s42, %s45
      %p51 = scmp.eq.s32.totalorder %s18, 0
      %p52 = por %p50, %p51
      %p53 = scmp.ne.s32.totalorder %s42, %s45
      %p54 = scmp.eq.s32.totalorder %s23, 3
      %p55 = por %p53, %p54
      %p56 = scmp.ne.s32.totalorder %s45, %s46
      %p57 = scmp.eq.s32.totalorder %s23, 0
      %p58 = por %p56, %p57
      %p59 = scmp.ne.s32.totalorder %s45, %s46
      %p60 = scmp.eq.s32.totalorder %s24, 3
      %p61 = por %p59, %p60
      %p63 = scmp.ne.s32.totalorder %s46, %s62
      %p64 = scmp.eq.s32.totalorder %s24, 0
      %p65 = por %p63, %p64
      %s67 = sadd.s32 %s66, 1
      %p70 = scmp.eq.s32.totalorder %s18, 3
      %p71 = scmp.ne.s32.totalorder %s66, %s68
      %p72 = scmp.eq.s32.totalorder %s18, 0
      %p73 = por %p71, %p72
      %p74 = scmp.ne.s32.totalorder %s66, %s68
      %p75 = scmp.eq.s32.totalorder %s23, 3
      %p76 = por %p74, %p75
      %p77 = scmp.ne.s32.totalorder %s68, %s69
      %p78 = scmp.eq.s32.totalorder %s23, 0
      %p79 = por %p77, %p78
      %p80 = scmp.ne.s32.totalorder %s68, %s69
      %p81 = scmp.eq.s32.totalorder %s24, 3
      %p82 = por %p80, %p81
      %p84 = scmp.ne.s32.totalorder %s69, %s83
      %p85 = scmp.eq.s32.totalorder %s24, 0
      %p86 = por %p84, %p85
      %s88 = sadd.s32 %s87, 1
      %p91 = scmp.eq.s32.totalorder %s18, 3
      %p92 = scmp.ne.s32.totalorder %s87, %s89
      %p93 = scmp.eq.s32.totalorder %s18, 0
      %p94 = por %p92, %p93
      %p95 = scmp.ne.s32.totalorder %s87, %s89
      %p96 = scmp.eq.s32.totalorder %s23, 3
      %p97 = por %p95, %p96
      %p98 = scmp.ne.s32.totalorder %s89, %s90
      %p99 = scmp.eq.s32.totalorder %s23, 0
      %p100 = por %p98, %p99
      %p101 = scmp.ne.s32.totalorder %s89, %s90
      %p102 = scmp.eq.s32.totalorder %s24, 3
      %p103 = por %p101, %p102
      %p105 = scmp.ne.s32.totalorder %s90, %s104
      %p106 = scmp.eq.s32.totalorder %s24, 0
      %p107 = por %p105, %p106
      %s109 = sadd.s32 %s108, 1
      %p112 = scmp.eq.s32.totalorder %s18, 3
      %p113 = scmp.ne.s32.totalorder %s108, %s110
      %p114 = scmp.eq.s32.totalorder %s18, 0
      %p115 = por %p113, %p114
      %p116 = scmp.ne.s32.totalorder %s108, %s110
      %p117 = scmp.eq.s32.totalorder %s23, 3
      %p118 = por %p116, %p117
      %p119 = scmp.ne.s32.totalorder %s110, %s111
      %p120 = scmp.eq.s32.totalorder %s23, 0
      %p121 = por %p119, %p120
      %p122 = scmp.ne.s32.totalorder %s110, %s111
      %p123 = scmp.eq.s32.totalorder %s24, 3
      %p124 = por %p122, %p123
      %p126 = scmp.ne.s32.totalorder %s111, %s125
      %p127 = scmp.eq.s32.totalorder %s24, 0
      %p128 = por %p126, %p127
      %s130 = sadd.s32 %s129, 1
      %p133 = scmp.eq.s32.totalorder %s18, 3
      %p134 = scmp.ne.s32.totalorder %s129, %s131
      %p135 = scmp.eq.s32.totalorder %s18, 0
      %p136 = por %p134, %p135
      %p137 = scmp.ne.s32.totalorder %s129, %s131
      %p138 = scmp.eq.s32.totalorder %s23, 3
      %p139 = por %p137, %p138
      %p140 = scmp.ne.s32.totalorder %s131, %s132
      %p141 = scmp.eq.s32.totalorder %s23, 0
      %p142 = por %p140, %p141
      %p143 = scmp.ne.s32.totalorder %s131, %s132
      %p144 = scmp.eq.s32.totalorder %s24, 3
      %p145 = por %p143, %p144
      %p147 = scmp.ne.s32.totalorder %s132, %s146
      %p148 = scmp.eq.s32.totalorder %s24, 0
      %p149 = por %p147, %p148
      %s151 = sadd.s32 %s150, 1
      %p154 = scmp.eq.s32.totalorder %s18, 3
      %p155 = scmp.ne.s32.totalorder %s150, %s152
      %p156 = scmp.eq.s32.totalorder %s18, 0
      %p157 = por %p155, %p156
      %p158 = scmp.ne.s32.totalorder %s150, %s152
      %p159 = scmp.eq.s32.totalorder %s23, 3
      %p160 = por %p158, %p159
      %p161 = scmp.ne.s32.totalorder %s152, %s153
      %p162 = scmp.eq.s32.totalorder %s23, 0
      %p163 = por %p161, %p162
      %p164 = scmp.ne.s32.totalorder %s152, %s153
      %p165 = scmp.eq.s32.totalorder %s24, 3
      %p166 = por %p164, %p165
      %p168 = scmp.ne.s32.totalorder %s153, %s167
      %p169 = scmp.eq.s32.totalorder %s24, 0
      %p170 = por %p168, %p169
      %s171 = ssub.s32 %s25, %s37
      %s172 = ssub.s32 %s26, %s33
      %s173 = sor.u32 %s171, %s172
      %p174 = scmp.eq.s32.totalorder %s173, 0
      %s176 = sadd.s32 %s175, 1
      %s177 = scalar_select %p174, %s175, %s176
      %p180 = pneg %p174
      %p181 = scmp.eq.s32.totalorder %s18, 3
      %p182 = por %p180, %p181
      %p183 = scmp.ne.s32.totalorder %s175, %s178
      %p184 = scmp.eq.s32.totalorder %s18, 0
      %p185 = por %p183, %p184
      %p186 = scmp.ne.s32.totalorder %s175, %s178
      %p187 = scmp.eq.s32.totalorder %s23, 3
      %p188 = por %p186, %p187
      %p189 = scmp.ne.s32.totalorder %s178, %s179
      %p190 = scmp.eq.s32.totalorder %s23, 0
      %p191 = por %p189, %p190
      %p192 = scmp.ne.s32.totalorder %s178, %s179
      %p193 = scmp.eq.s32.totalorder %s24, 3
      %p194 = por %p192, %p193
      %p196 = scmp.ne.s32.totalorder %s179, %s195
      %p197 = scmp.eq.s32.totalorder %s24, 0
      %p198 = por %p196, %p197
      %p199 = scmp.le.s32.totalorder 1, %s18
      %p200 = scmp.lt.s32.totalorder %s18, 5
      %p201 = pnand %p199, %p200
      %p202 = pneg %p201
      // Predicated region
      $region9: #{tpu_custom_call.1} parent=5 // pred_check
        _
      $region10: #{tpu_custom_call.1} parent=5 // pred_check_branch
        %204 = sbr.rel (%p201) target = $region12
      $region11: #{tpu_custom_call.1} parent=5 // pred_region
        %s205 = ssub.s32 %s18, 1
        // Predicated region
        $region13: #{tpu_custom_call.1} parent=11 // pred_check
          %p206 = pneg %p79
        $region14: #{tpu_custom_call.1} parent=11 // pred_check_branch
          %208 = sbr.rel (%p206) target = $region16
        $region15: #{tpu_custom_call.1} parent=11 // pred_region
          _
        $region16: #{tpu_custom_call.1} parent=11 // pred_fallthru
          _
        // Predicated region
        $region17: #{tpu_custom_call.1} parent=11 // pred_check
          %p209 = pneg %p100
        $region18: #{tpu_custom_call.1} parent=11 // pred_check_branch
          %211 = sbr.rel (%p209) target = $region20
        $region19: #{tpu_custom_call.1} parent=11 // pred_region
          _
        $region20: #{tpu_custom_call.1} parent=11 // pred_fallthru
          _
        // Predicated region
        $region21: #{tpu_custom_call.1} parent=11 // pred_check
          %p212 = pneg %p121
        $region22: #{tpu_custom_call.1} parent=11 // pred_check_branch
          %214 = sbr.rel (%p212) target = $region24
        $region23: #{tpu_custom_call.1} parent=11 // pred_region
          _
        $region24: #{tpu_custom_call.1} parent=11 // pred_fallthru
          _
        // Predicated region
        $region25: #{tpu_custom_call.1} parent=11 // pred_check
          %p215 = pneg %p142
        $region26: #{tpu_custom_call.1} parent=11 // pred_check_branch
          %217 = sbr.rel (%p215) target = $region28
        $region27: #{tpu_custom_call.1} parent=11 // pred_region
          _
        $region28: #{tpu_custom_call.1} parent=11 // pred_fallthru
          _
        // Predicated region
        $region29: #{tpu_custom_call.1} parent=11 // pred_check
          %p218 = pneg %p163
        $region30: #{tpu_custom_call.1} parent=11 // pred_check_branch
          %220 = sbr.rel (%p218) target = $region32
        $region31: #{tpu_custom_call.1} parent=11 // pred_region
          _
        $region32: #{tpu_custom_call.1} parent=11 // pred_fallthru
          _
      $region12: #{tpu_custom_call.1} parent=5 // pred_fallthru
        _
      %p221 = scmp.lt.s32.totalorder %s18, 4
      // Predicated region
      $region33: #{tpu_custom_call.1} parent=5 // pred_check
        %p222 = pneg %p221
      $region34: #{tpu_custom_call.1} parent=5 // pred_check_branch
        %224 = sbr.rel (%p222) target = $region36
      $region35: #{tpu_custom_call.1} parent=5 // pred_region
        // Predicated region
        $region37: #{tpu_custom_call.1} parent=35 // pred_check
          %p225 = pneg %p52
        $region38: #{tpu_custom_call.1} parent=35 // pred_check_branch
          %227 = sbr.rel (%p225) target = $region40
        $region39: #{tpu_custom_call.1} parent=35 // pred_region
          %s228 = sand.u32 %s42, 1
          %s229 = scalar_lea.sflag [#allocation5], %s228
          %s230 = sand.u32 %s42, 1
          %s231 = smul.addr %s230, 128
          %s232 = scalar_lea.vmem [#allocation4], %s231
          %s233 = smul.u32 4, %s26
          %s235 = ssub.s32 2048, 2048
          %236 = vsyncadd %s229, %s235
          %s237 = smul.addr %s25, 32
          %s238 = sadd.s32 %s233, %s237
          %s239 = smul.addr %s238, 128
          %s240 = scalar_lea.hbm %s0, %s239
          %s241 = sshll.u32 %s232, 4
          %s242 = int_to_ptr.vmem [resolvable:$true] %s241
          %247 = dma.hbm_to_vmem [thread:$0]  %s240, 2048, %s242, %s229, 1024, 512, 32
        $region40: #{tpu_custom_call.1} parent=35 // pred_fallthru
          _
      $region36: #{tpu_custom_call.1} parent=5 // pred_fallthru
        _
      %p248 = scmp.le.s32.totalorder 1, %s18
      %p249 = scmp.lt.s32.totalorder %s18, 5
      %p250 = pnand %p248, %p249
      %p251 = pneg %p250
      // Predicated region
      $region41: #{tpu_custom_call.1} parent=5 // pred_check
        _
      $region42: #{tpu_custom_call.1} parent=5 // pred_check_branch
        %253 = sbr.rel (%p250) target = $region44
      $region43: #{tpu_custom_call.1} parent=5 // pred_region
        %s254 = ssub.s32 %s18, 1
        %s255 = sand.u32 %s45, 1
        %s256 = scalar_lea.sflag [#allocation5], %s255
        %s257 = sand.u32 %s45, 1
        %s258 = smul.addr %s257, 128
        %s259 = scalar_lea.vmem [#allocation4], %s258
        // Predicated region
        $region45: #{tpu_custom_call.1} parent=43 // pred_check
          %p260 = pneg %p58
        $region46: #{tpu_custom_call.1} parent=43 // pred_check_branch
          %262 = sbr.rel (%p260) target = $region48
        $region47: #{tpu_custom_call.1} parent=43 // pred_region
          %263 = dma.done %s256, 2048
        $region48: #{tpu_custom_call.1} parent=43 // pred_fallthru
          _
        %s264 = sand.u32 %s45, 1
        %s265 = scalar_lea.sflag [#allocation5], %s264
        %s266 = sand.u32 %s45, 1
        %s267 = smul.addr %s266, 128
        %s268 = scalar_lea.vmem [#allocation4], %s267
        %p269 = pneg %p58
        %p270 = pneg %p55
        %p271 = pneg %p79
        %p272 = pneg %p76
        %p273 = pneg %p100
        %p274 = pneg %p97
        %p275 = pneg %p121
        %p276 = pneg %p118
        %p277 = pneg %p142
        %p278 = pneg %p139
        %p279 = pneg %p163
        %p280 = pneg %p160
        %p281 = pneg %p191
        %p282 = pneg %p188
        %s283 = sand.u32 %s178, 1
        %s284 = scalar_lea.sflag [#allocation6], %s283
        %s285 = sand.u32 %s178, 1
        %s286 = smul.addr %s285, 128
        %s287 = scalar_lea.vmem [#allocation7], %s286
        %s288 = smul.u32 4, %s28
        %s289 = smul.u32 4, %s28
        %v291 = vld [vmem:[%s259] sm:$0xff]
        %v292 = vld [vmem:[%s259 + $0x8] sm:$0xff]
        %v293 = vld [vmem:[%s259 + $0x10] sm:$0xff]
        %v294 = vld [vmem:[%s259 + $0x18] sm:$0xff]
        %v295 = vld [vmem:[%s259 + $0x20] sm:$0xff]
        %v296 = vld [vmem:[%s259 + $0x28] sm:$0xff]
        %v297 = vld [vmem:[%s259 + $0x30] sm:$0xff]
        %v298 = vld [vmem:[%s259 + $0x38] sm:$0xff]
        %v299 = vld [vmem:[%s259 + $0x40] sm:$0xff]
        %v300 = vld [vmem:[%s259 + $0x48] sm:$0xff]
        %v301 = vld [vmem:[%s259 + $0x50] sm:$0xff]
        %v302 = vld [vmem:[%s259 + $0x58] sm:$0xff]
        %v303 = vld [vmem:[%s259 + $0x60] sm:$0xff]
        %v304 = vld [vmem:[%s259 + $0x68] sm:$0xff]
        %v305 = vld [vmem:[%s259 + $0x70] sm:$0xff]
        %v306 = vld [vmem:[%s259 + $0x78] sm:$0xff]
        %v307 = vmul.f32 %v291, %v291
        %v308 = vmul.f32 %v292, %v292
        %v309 = vmul.f32 %v293, %v293
        %v310 = vmul.f32 %v294, %v294
        %v311 = vmul.f32 %v295, %v295
        %v312 = vmul.f32 %v296, %v296
        %v313 = vmul.f32 %v297, %v297
        %v314 = vmul.f32 %v298, %v298
        %v315 = vmul.f32 %v299, %v299
        %v316 = vmul.f32 %v300, %v300
        %v317 = vmul.f32 %v301, %v301
        %v318 = vmul.f32 %v302, %v302
        %v319 = vmul.f32 %v303, %v303
        %v320 = vmul.f32 %v304, %v304
        %v321 = vmul.f32 %v305, %v305
        %v322 = vmul.f32 %v306, %v306
        %v323 = vadd.f32 %v307, %v311
        %v324 = vadd.f32 %v323, %v315
        %v325 = vadd.f32 %v324, %v319
        %v326 = vrot.slane %v325, 4
        %v327 = vadd.f32 %v325, %v326
        %v328 = vrot.slane %v327, 2
        %v329 = vadd.f32 %v327, %v328
        %v330 = vrot.slane %v329, 1
        %v331 = vadd.f32 %v329, %v330
        %v332 = vadd.f32 %v308, %v312
        %v333 = vadd.f32 %v332, %v316
        %v334 = vadd.f32 %v333, %v320
        %v335 = vrot.slane %v334, 4
        %v336 = vadd.f32 %v334, %v335
        %v337 = vrot.slane %v336, 2
        %v338 = vadd.f32 %v336, %v337
        %v339 = vrot.slane %v338, 1
        %v340 = vadd.f32 %v338, %v339
        %v341 = vadd.f32 %v309, %v313
        %v342 = vadd.f32 %v341, %v317
        %v343 = vadd.f32 %v342, %v321
        %v344 = vrot.slane %v343, 4
        %v345 = vadd.f32 %v343, %v344
        %v346 = vrot.slane %v345, 2
        %v347 = vadd.f32 %v345, %v346
        %v348 = vrot.slane %v347, 1
        %v349 = vadd.f32 %v347, %v348
        %v350 = vadd.f32 %v310, %v314
        %v351 = vadd.f32 %v350, %v318
        %v352 = vadd.f32 %v351, %v322
        %v353 = vrot.slane %v352, 4
        %v354 = vadd.f32 %v352, %v353
        %v355 = vrot.slane %v354, 2
        %v356 = vadd.f32 %v354, %v355
        %v357 = vrot.slane %v356, 1
        %v358 = vadd.f32 %v356, %v357
        %v359 = vrsqrt.pop %v331
        %v360 = vmul.f32 %v331, %v359
        %vm361 = vcmp.eq.f32.partialorder %v331, inf
        %v362 = vsel %vm361, %v331, %v360
        %vm363 = vcmp.eq.f32.partialorder %v331, 0.0
        %v364 = vand.u32 %v331, 2147483648
        %v365 = vsel %vm363, %v364, %v362
        %v366 = vrsqrt.pop %v340
        %v367 = vmul.f32 %v340, %v366
        %vm368 = vcmp.eq.f32.partialorder %v340, inf
        %v369 = vsel %vm368, %v340, %v367
        %vm370 = vcmp.eq.f32.partialorder %v340, 0.0
        %v371 = vand.u32 %v340, 2147483648
        %v372 = vsel %vm370, %v371, %v369
        %v373 = vrsqrt.pop %v349
        %v374 = vmul.f32 %v349, %v373
        %vm375 = vcmp.eq.f32.partialorder %v349, inf
        %v376 = vsel %vm375, %v349, %v374
        %vm377 = vcmp.eq.f32.partialorder %v349, 0.0
        %v378 = vand.u32 %v349, 2147483648
        %v379 = vsel %vm377, %v378, %v376
        %v380 = vrsqrt.pop %v358
        %v381 = vmul.f32 %v358, %v380
        %vm382 = vcmp.eq.f32.partialorder %v358, inf
        %v383 = vsel %vm382, %v358, %v381
        %vm384 = vcmp.eq.f32.partialorder %v358, 0.0
        %v385 = vand.u32 %v358, 2147483648
        %v386 = vsel %vm384, %v385, %v383
        %v387 = vmax.f32 %v365, 1e-12
        %v388 = vmax.f32 %v372, 1e-12
        %v389 = vmax.f32 %v379, 1e-12
        %v390 = vmax.f32 %v386, 1e-12
        %v391 = vrcp.pop %v387
        %v392 = vmul.f32 5.656854, %v391
        %v393 = vrcp.pop %v388
        %v394 = vmul.f32 5.656854, %v393
        %v395 = vrcp.pop %v389
        %v396 = vmul.f32 5.656854, %v395
        %v397 = vrcp.pop %v390
        %v398 = vmul.f32 5.656854, %v397
        %v399 = vmul.f32 %v291, %v392
        %v400 = vmul.f32 %v292, %v394
        %v401 = vmul.f32 %v293, %v396
        %v402 = vmul.f32 %v294, %v398
        %v403 = vmul.f32 %v295, %v392
        %v404 = vmul.f32 %v296, %v394
        %v405 = vmul.f32 %v297, %v396
        %v406 = vmul.f32 %v298, %v398
        %v407 = vmul.f32 %v299, %v392
        %v408 = vmul.f32 %v300, %v394
        %v409 = vmul.f32 %v301, %v396
        %v410 = vmul.f32 %v302, %v398
        %v411 = vmul.f32 %v303, %v392
        %v412 = vmul.f32 %v304, %v394
        %v413 = vmul.f32 %v305, %v396
        %v414 = vmul.f32 %v306, %v398
        %v415 = vld [vmem:[%s1] sm:$0xff]
        %v416 = vld [vmem:[%s1 + $0x8] sm:$0xff]
        %v417 = vld [vmem:[%s1 + $0x10] sm:$0xff]
        %v418 = vld [vmem:[%s1 + $0x18] sm:$0xff]
        %420 = vset.pattern.permute.xlu0 0
        %421 = vperm.xlu0 %420, %v415
        %v422 = vpop.permute.xlu0 %421
        %425 = vset.pattern.permute.xlu0 0
        %426 = vperm.xlu0 %425, %v416
        %v427 = vpop.permute.xlu0 %426
        %430 = vset.pattern.permute.xlu0 0
        %431 = vperm.xlu0 %430, %v417
        %v432 = vpop.permute.xlu0 %431
        %435 = vset.pattern.permute.xlu0 0
        %436 = vperm.xlu0 %435, %v418
        %v437 = vpop.permute.xlu0 %436
        %v439 = vmul.f32 %v399, %v422
        %v440 = vmul.f32 %v400, %v422
        %v441 = vmul.f32 %v401, %v422
        %v442 = vmul.f32 %v402, %v422
        %v443 = vmul.f32 %v403, %v427
        %v444 = vmul.f32 %v404, %v427
        %v445 = vmul.f32 %v405, %v427
        %v446 = vmul.f32 %v406, %v427
        %v447 = vmul.f32 %v407, %v432
        %v448 = vmul.f32 %v408, %v432
        %v449 = vmul.f32 %v409, %v432
        %v450 = vmul.f32 %v410, %v432
        %v451 = vmul.f32 %v411, %v437
        %v452 = vmul.f32 %v412, %v437
        %v453 = vmul.f32 %v413, %v437
        %v454 = vmul.f32 %v414, %v437
        %v455 = vpack.c.bf16 %v443, %v439
        %v456 = vpack.c.bf16 %v444, %v440
        %v457 = vpack.c.bf16 %v445, %v441
        %v458 = vpack.c.bf16 %v446, %v442
        %v459 = vpack.c.bf16 %v451, %v447
        %v460 = vpack.c.bf16 %v452, %v448
        %v461 = vpack.c.bf16 %v453, %v449
        %v462 = vpack.c.bf16 %v454, %v450
        %v463 = vld [vmem:[%s2] sm:$0xf]
        %v464 = vld [vmem:[%s2 + $0x4] sm:$0xf]
        %v465 = vld [vmem:[%s2 + $0x8] sm:$0xf]
        %v466 = vld [vmem:[%s2 + $0xc] sm:$0xf]
        %v467 = vld [vmem:[%s2 + $0x10] sm:$0xf]
        %v468 = vld [vmem:[%s2 + $0x14] sm:$0xf]
        %v469 = vld [vmem:[%s2 + $0x18] sm:$0xf]
        %v470 = vld [vmem:[%s2 + $0x1c] sm:$0xf]
        %v471 = vld [vmem:[%s2 + $0x20] sm:$0xf]
        %v472 = vld [vmem:[%s2 + $0x24] sm:$0xf]
        %v473 = vld [vmem:[%s2 + $0x28] sm:$0xf]
        %v474 = vld [vmem:[%s2 + $0x2c] sm:$0xf]
        %v475 = vld [vmem:[%s3] sm:$0xff]
        %v476 = vld [vmem:[%s3 + $0x8] sm:$0xff]
        %v477 = vld [vmem:[%s3 + $0x10] sm:$0xff]
        %v478 = vld [vmem:[%s3 + $0x18] sm:$0xff]
        %v479 = vld [vmem:[%s3 + $0x20] sm:$0xff]
        %v480 = vld [vmem:[%s3 + $0x28] sm:$0xff]
        %v481 = vld [vmem:[%s3 + $0x30] sm:$0xff]
        %v482 = vld [vmem:[%s3 + $0x38] sm:$0xff]
        %v483 = vld [vmem:[%s3 + $0x40] sm:$0xff]
        %v484 = vld [vmem:[%s3 + $0x48] sm:$0xff]
        %v485 = vld [vmem:[%s3 + $0x50] sm:$0xff]
        %v486 = vld [vmem:[%s3 + $0x58] sm:$0xff]
        %488 = vset.pattern.permute.xlu0 0
        %489 = vperm.xlu0 %488, %v475
        %v490 = vpop.permute.xlu0 %489
        %493 = vset.pattern.permute.xlu0 0
        %494 = vperm.xlu0 %493, %v476
        %v495 = vpop.permute.xlu0 %494
        %498 = vset.pattern.permute.xlu0 0
        %499 = vperm.xlu0 %498, %v477
        %v500 = vpop.permute.xlu0 %499
        %503 = vset.pattern.permute.xlu0 0
        %504 = vperm.xlu0 %503, %v478
        %v505 = vpop.permute.xlu0 %504
        %508 = vset.pattern.permute.xlu0 0
        %509 = vperm.xlu0 %508, %v479
        %v510 = vpop.permute.xlu0 %509
        %513 = vset.pattern.permute.xlu0 0
        %514 = vperm.xlu0 %513, %v480
        %v515 = vpop.permute.xlu0 %514
        %518 = vset.pattern.permute.xlu0 0
        %519 = vperm.xlu0 %518, %v481
        %v520 = vpop.permute.xlu0 %519
        %523 = vset.pattern.permute.xlu0 0
        %524 = vperm.xlu0 %523, %v482
        %v525 = vpop.permute.xlu0 %524
        %528 = vset.pattern.permute.xlu0 0
        %529 = vperm.xlu0 %528, %v483
        %v530 = vpop.permute.xlu0 %529
        %533 = vset.pattern.permute.xlu0 0
        %534 = vperm.xlu0 %533, %v484
        %v535 = vpop.permute.xlu0 %534
        %538 = vset.pattern.permute.xlu0 0
        %539 = vperm.xlu0 %538, %v485
        %v540 = vpop.permute.xlu0 %539
        %543 = vset.pattern.permute.xlu0 0
        %544 = vperm.xlu0 %543, %v486
        %v545 = vpop.permute.xlu0 %544
        %v559 = vunpack.c.l.b16 %v463
        %v560 = vunpack.c.l.b16 %v464
        %v561 = vunpack.c.l.b16 %v465
        %v562 = vunpack.c.l.b16 %v466
        %v563 = vunpack.c.l.b16 %v467
        %v564 = vunpack.c.l.b16 %v468
        %v565 = vunpack.c.l.b16 %v469
        %v566 = vunpack.c.l.b16 %v470
        %v567 = vunpack.c.l.b16 %v471
        %v568 = vunpack.c.l.b16 %v472
        %v569 = vunpack.c.l.b16 %v473
        %v570 = vunpack.c.l.b16 %v474
        %v571 = vpack.c.b16 %v560, %v559
        %v572 = vpack.c.b16 %v562, %v561
        %v573 = vpack.c.b16 %v564, %v563
        %v574 = vpack.c.b16 %v566, %v565
        %v575 = vpack.c.b16 %v568, %v567
        %v576 = vpack.c.b16 %v570, %v569
        %vm577 = vcmask 261120
        %v579 = vsel %vm577, %v571, 0
        %v582 = vsel %vm577, %v572, 0
        %v585 = vsel %vm577, %v573, 0
        %v588 = vsel %vm577, %v574, 0
        %v591 = vsel %vm577, %v575, 0
        %v594 = vsel %vm577, %v576, 0
        %596 = vmatprep.subr.bf16.mxu0 0
        %597 = vmatpush1.bf16.msra.mxu0 0
        %598 = vmatprep.subr.bf16.mxu0 0
        %599 = vmatpush1.bf16.msra.mxu0 0
        %600 = vmatprep.subr.bf16.mxu0 0
        %601 = vmatpush1.bf16.msra.mxu0 0
        %602 = vmatprep.subr.bf16.mxu0 0
        %603 = vmatpush1.bf16.msra.mxu0 0
        %604 = vmatprep.subr.bf16.mxu0 0
        %605 = vmatpush1.bf16.msra.mxu0 0
        %606 = vmatprep.subr.bf16.mxu0 0
        %607 = vmatpush1.bf16.msra.mxu0 0
        %608 = vmatprep.subr.bf16.mxu0 %v460
        %609 = vmatpush1.bf16.msra.mxu0 %v459
        %610 = vmatprep.subr.bf16.mxu0 %v456
        %611 = vmatpush1.bf16.msra.mxu0 %v455
        %612 = vmatprep.subr.bf16.mxu0 0
        %613 = vmatpush2.bf16.msra.mxu0 0
        %614 = vmatprep.subr.bf16.mxu0 0
        %615 = vmatpush2.bf16.msra.mxu0 0
        %616 = vmatprep.subr.bf16.mxu0 0
        %617 = vmatpush2.bf16.msra.mxu0 0
        %618 = vmatprep.subr.bf16.mxu0 0
        %619 = vmatpush2.bf16.msra.mxu0 0
        %620 = vmatprep.subr.bf16.mxu0 0
        %621 = vmatpush2.bf16.msra.mxu0 0
        %622 = vmatprep.subr.bf16.mxu0 0
        %623 = vmatpush2.bf16.msra.mxu0 0
        %624 = vmatprep.subr.bf16.mxu0 0
        %625 = vmatpush2.bf16.msra.mxu0 0
        %626 = vmatprep.subr.bf16.mxu0 0
        %627 = vmatpush2.bf16.msra.mxu0 0
        %628 = vmatprep.mubr.bf16.mxu0 0
        %629 = vmatmul.mubr.bf16.gmra.mxu0 %v579
        %v630 = vpop.f32.mrf.mxu0
        %v631 = vadd.f32 %v490, %v630
        %v632 = vpop.f32.mrf.mxu0
        %v633 = vadd.f32 %v490, %v632
        %v634 = vpop.f32.mrf.mxu0
        %v635 = vadd.f32 %v495, %v634
        %v636 = vpop.f32.mrf.mxu0
        %v637 = vadd.f32 %v495, %v636
        %638 = vmatprep.mubr.bf16.mxu0 0
        %639 = vmatmul.mubr.bf16.gmra.mxu0 %v582
        %v640 = vpop.f32.mrf.mxu0
        %v641 = vadd.f32 %v500, %v640
        %v642 = vpop.f32.mrf.mxu0
        %v643 = vadd.f32 %v500, %v642
        %v644 = vpop.f32.mrf.mxu0
        %v645 = vadd.f32 %v505, %v644
        %v646 = vpop.f32.mrf.mxu0
        %v647 = vadd.f32 %v505, %v646
        %648 = vmatprep.mubr.bf16.mxu0 0
        %649 = vmatmul.mubr.bf16.gmra.mxu0 %v585
        %v650 = vpop.f32.mrf.mxu0
        %v651 = vadd.f32 %v510, %v650
        %v652 = vpop.f32.mrf.mxu0
        %v653 = vadd.f32 %v510, %v652
        %v654 = vpop.f32.mrf.mxu0
        %v655 = vadd.f32 %v515, %v654
        %v656 = vpop.f32.mrf.mxu0
        %v657 = vadd.f32 %v515, %v656
        %658 = vmatprep.mubr.bf16.mxu0 0
        %659 = vmatmul.mubr.bf16.gmra.mxu0 %v588
        %v660 = vpop.f32.mrf.mxu0
        %v661 = vadd.f32 %v520, %v660
        %v662 = vpop.f32.mrf.mxu0
        %v663 = vadd.f32 %v520, %v662
        %v664 = vpop.f32.mrf.mxu0
        %v665 = vadd.f32 %v525, %v664
        %v666 = vpop.f32.mrf.mxu0
        %v667 = vadd.f32 %v525, %v666
        %668 = vmatprep.mubr.bf16.mxu0 0
        %669 = vmatmul.mubr.bf16.gmra.mxu0 %v591
        %v670 = vpop.f32.mrf.mxu0
        %v671 = vadd.f32 %v530, %v670
        %v672 = vpop.f32.mrf.mxu0
        %v673 = vadd.f32 %v530, %v672
        %v674 = vpop.f32.mrf.mxu0
        %v675 = vadd.f32 %v535, %v674
        %v676 = vpop.f32.mrf.mxu0
        %v677 = vadd.f32 %v535, %v676
        %678 = vmatprep.mubr.bf16.mxu0 0
        %679 = vmatmul.mubr.bf16.gmra.mxu0 %v594
        %v680 = vpop.f32.mrf.mxu0
        %v681 = vadd.f32 %v540, %v680
        %v682 = vpop.f32.mrf.mxu0
        %v683 = vadd.f32 %v540, %v682
        %v684 = vpop.f32.mrf.mxu0
        %v685 = vadd.f32 %v545, %v684
        %v686 = vpop.f32.mrf.mxu0
        %v687 = vadd.f32 %v545, %v686
        %688 = vdwg.mxu0
        %689 = vmatprep.subr.bf16.mxu0 0
        %690 = vmatpush1.bf16.msra.mxu0 0
        %691 = vmatprep.subr.bf16.mxu0 0
        %692 = vmatpush1.bf16.msra.mxu0 0
        %693 = vmatprep.subr.bf16.mxu0 0
        %694 = vmatpush1.bf16.msra.mxu0 0
        %695 = vmatprep.subr.bf16.mxu0 0
        %696 = vmatpush1.bf16.msra.mxu0 0
        %697 = vmatprep.subr.bf16.mxu0 0
        %698 = vmatpush1.bf16.msra.mxu0 0
        %699 = vmatprep.subr.bf16.mxu0 0
        %700 = vmatpush1.bf16.msra.mxu0 0
        %701 = vmatprep.subr.bf16.mxu0 %v462
        %702 = vmatpush1.bf16.msra.mxu0 %v461
        %703 = vmatprep.subr.bf16.mxu0 %v458
        %704 = vmatpush1.bf16.msra.mxu0 %v457
        %705 = vmatprep.subr.bf16.mxu0 0
        %706 = vmatpush2.bf16.msra.mxu0 0
        %707 = vmatprep.subr.bf16.mxu0 0
        %708 = vmatpush2.bf16.msra.mxu0 0
        %709 = vmatprep.subr.bf16.mxu0 0
        %710 = vmatpush2.bf16.msra.mxu0 0
        %711 = vmatprep.subr.bf16.mxu0 0
        %712 = vmatpush2.bf16.msra.mxu0 0
        %713 = vmatprep.subr.bf16.mxu0 0
        %714 = vmatpush2.bf16.msra.mxu0 0
        %715 = vmatprep.subr.bf16.mxu0 0
        %716 = vmatpush2.bf16.msra.mxu0 0
        %717 = vmatprep.subr.bf16.mxu0 0
        %718 = vmatpush2.bf16.msra.mxu0 0
        %719 = vmatprep.subr.bf16.mxu0 0
        %720 = vmatpush2.bf16.msra.mxu0 0
        %721 = vmatprep.mubr.bf16.mxu0 0
        %722 = vmatmul.mubr.bf16.gmra.mxu0 %v579
        %v723 = vpop.f32.mrf.mxu0
        %v724 = vadd.f32 %v490, %v723
        %v725 = vpop.f32.mrf.mxu0
        %v726 = vadd.f32 %v490, %v725
        %v727 = vpop.f32.mrf.mxu0
        %v728 = vadd.f32 %v495, %v727
        %v729 = vpop.f32.mrf.mxu0
        %v730 = vadd.f32 %v495, %v729
        %731 = vmatprep.mubr.bf16.mxu0 0
        %732 = vmatmul.mubr.bf16.gmra.mxu0 %v582
        %v733 = vpop.f32.mrf.mxu0
        %v734 = vadd.f32 %v500, %v733
        %v735 = vpop.f32.mrf.mxu0
        %v736 = vadd.f32 %v500, %v735
        %v737 = vpop.f32.mrf.mxu0
        %v738 = vadd.f32 %v505, %v737
        %v739 = vpop.f32.mrf.mxu0
        %v740 = vadd.f32 %v505, %v739
        %741 = vmatprep.mubr.bf16.mxu0 0
        %742 = vmatmul.mubr.bf16.gmra.mxu0 %v585
        %v743 = vpop.f32.mrf.mxu0
        %v744 = vadd.f32 %v510, %v743
        %v745 = vpop.f32.mrf.mxu0
        %v746 = vadd.f32 %v510, %v745
        %v747 = vpop.f32.mrf.mxu0
        %v748 = vadd.f32 %v515, %v747
        %v749 = vpop.f32.mrf.mxu0
        %v750 = vadd.f32 %v515, %v749
        %751 = vmatprep.mubr.bf16.mxu0 0
        %752 = vmatmul.mubr.bf16.gmra.mxu0 %v588
        %v753 = vpop.f32.mrf.mxu0
        %v754 = vadd.f32 %v520, %v753
        %v755 = vpop.f32.mrf.mxu0
        %v756 = vadd.f32 %v520, %v755
        %v757 = vpop.f32.mrf.mxu0
        %v758 = vadd.f32 %v525, %v757
        %v759 = vpop.f32.mrf.mxu0
        %v760 = vadd.f32 %v525, %v759
        %761 = vmatprep.mubr.bf16.mxu0 0
        %762 = vmatmul.mubr.bf16.gmra.mxu0 %v591
        %v763 = vpop.f32.mrf.mxu0
        %v764 = vadd.f32 %v530, %v763
        %v765 = vpop.f32.mrf.mxu0
        %v766 = vadd.f32 %v530, %v765
        %v767 = vpop.f32.mrf.mxu0
        %v768 = vadd.f32 %v535, %v767
        %v769 = vpop.f32.mrf.mxu0
        %v770 = vadd.f32 %v535, %v769
        %771 = vmatprep.mubr.bf16.mxu0 0
        %772 = vmatmul.mubr.bf16.gmra.mxu0 %v594
        %v773 = vpop.f32.mrf.mxu0
        %v774 = vadd.f32 %v540, %v773
        %v775 = vpop.f32.mrf.mxu0
        %v776 = vadd.f32 %v540, %v775
        %v777 = vpop.f32.mrf.mxu0
        %v778 = vadd.f32 %v545, %v777
        %v779 = vpop.f32.mrf.mxu0
        %v780 = vadd.f32 %v545, %v779
        %781 = vdwg.mxu0
        %v782 = vpack.c.bf16 %v635, %v631
        %v783 = vpack.c.bf16 %v637, %v633
        %v784 = vpack.c.bf16 %v728, %v724
        %v785 = vpack.c.bf16 %v730, %v726
        %v786 = vpack.c.bf16 %v645, %v641
        %v787 = vpack.c.bf16 %v647, %v643
        %v788 = vpack.c.bf16 %v738, %v734
        %v789 = vpack.c.bf16 %v740, %v736
        %v790 = vpack.c.bf16 %v655, %v651
        %v791 = vpack.c.bf16 %v657, %v653
        %v792 = vpack.c.bf16 %v748, %v744
        %v793 = vpack.c.bf16 %v750, %v746
        %v794 = vpack.c.bf16 %v665, %v661
        %v795 = vpack.c.bf16 %v667, %v663
        %v796 = vpack.c.bf16 %v758, %v754
        %v797 = vpack.c.bf16 %v760, %v756
        %v798 = vpack.c.bf16 %v675, %v671
        %v799 = vpack.c.bf16 %v677, %v673
        %v800 = vpack.c.bf16 %v768, %v764
        %v801 = vpack.c.bf16 %v770, %v766
        %v802 = vpack.c.bf16 %v685, %v681
        %v803 = vpack.c.bf16 %v687, %v683
        %v804 = vpack.c.bf16 %v778, %v774
        %v805 = vpack.c.bf16 %v780, %v776
        %v830 = vunpack.c.l.b16 %v782
        %v831 = vunpack.c.l.b16 %v783
        %v832 = vunpack.c.l.b16 %v784
        %v833 = vunpack.c.l.b16 %v785
        %v834 = vunpack.c.h.b16 %v782
        %v835 = vunpack.c.h.b16 %v783
        %v836 = vunpack.c.h.b16 %v784
        %v837 = vunpack.c.h.b16 %v785
        %v838 = vunpack.c.l.b16 %v786
        %v839 = vunpack.c.l.b16 %v787
        %v840 = vunpack.c.l.b16 %v788
        %v841 = vunpack.c.l.b16 %v789
        %v842 = vunpack.c.h.b16 %v786
        %v843 = vunpack.c.h.b16 %v787
        %v844 = vunpack.c.h.b16 %v788
        %v845 = vunpack.c.h.b16 %v789
        %v846 = vunpack.c.l.b16 %v790
        %v847 = vunpack.c.l.b16 %v791
        %v848 = vunpack.c.l.b16 %v792
        %v849 = vunpack.c.l.b16 %v793
        %v850 = vunpack.c.h.b16 %v790
        %v851 = vunpack.c.h.b16 %v791
        %v852 = vunpack.c.h.b16 %v792
        %v853 = vunpack.c.h.b16 %v793
        %v854 = vunpack.c.l.b16 %v794
        %v855 = vunpack.c.l.b16 %v795
        %v856 = vunpack.c.l.b16 %v796
        %v857 = vunpack.c.l.b16 %v797
        %v858 = vunpack.c.h.b16 %v794
        %v859 = vunpack.c.h.b16 %v795
        %v860 = vunpack.c.h.b16 %v796
        %v861 = vunpack.c.h.b16 %v797
        %v862 = vunpack.c.l.b16 %v798
        %v863 = vunpack.c.l.b16 %v799
        %v864 = vunpack.c.l.b16 %v800
        %v865 = vunpack.c.l.b16 %v801
        %v866 = vunpack.c.h.b16 %v798
        %v867 = vunpack.c.h.b16 %v799
        %v868 = vunpack.c.h.b16 %v800
        %v869 = vunpack.c.h.b16 %v801
        %v870 = vunpack.c.l.b16 %v802
        %v871 = vunpack.c.l.b16 %v803
        %v872 = vunpack.c.l.b16 %v804
        %v873 = vunpack.c.l.b16 %v805
        %v874 = vunpack.c.h.b16 %v802
        %v875 = vunpack.c.h.b16 %v803
        %v876 = vunpack.c.h.b16 %v804
        %v877 = vunpack.c.h.b16 %v805
        %v878 = vpack.c.b16 %v831, %v830
        %v879 = vpack.c.b16 %v833, %v832
        %v880 = vpack.c.b16 %v835, %v834
        %v881 = vpack.c.b16 %v837, %v836
        %v882 = vpack.c.b16 %v839, %v838
        %v883 = vpack.c.b16 %v841, %v840
        %v884 = vpack.c.b16 %v843, %v842
        %v885 = vpack.c.b16 %v845, %v844
        %v886 = vpack.c.b16 %v847, %v846
        %v887 = vpack.c.b16 %v849, %v848
        %v888 = vpack.c.b16 %v851, %v850
        %v889 = vpack.c.b16 %v853, %v852
        %v890 = vpack.c.b16 %v855, %v854
        %v891 = vpack.c.b16 %v857, %v856
        %v892 = vpack.c.b16 %v859, %v858
        %v893 = vpack.c.b16 %v861, %v860
        %v894 = vpack.c.b16 %v863, %v862
        %v895 = vpack.c.b16 %v865, %v864
        %v896 = vpack.c.b16 %v867, %v866
        %v897 = vpack.c.b16 %v869, %v868
        %v898 = vpack.c.b16 %v871, %v870
        %v899 = vpack.c.b16 %v873, %v872
        %v900 = vpack.c.b16 %v875, %v874
        %v901 = vpack.c.b16 %v877, %v876
        %926 = vst [vmem:[#allocation2] sm:$0xff] %v878
        %927 = vst [vmem:[#allocation2 + $0x8] sm:$0xff] %v879
        %928 = vst [vmem:[#allocation2 + $0x10] sm:$0xff] %v880
        %929 = vst [vmem:[#allocation2 + $0x18] sm:$0xff] %v881
        %930 = vst [vmem:[#allocation2 + $0x20] sm:$0xff] %v882
        %931 = vst [vmem:[#allocation2 + $0x28] sm:$0xff] %v883
        %932 = vst [vmem:[#allocation2 + $0x30] sm:$0xff] %v884
        %933 = vst [vmem:[#allocation2 + $0x38] sm:$0xff] %v885
        %934 = vst [vmem:[#allocation2 + $0x40] sm:$0xff] %v886
        %935 = vst [vmem:[#allocation2 + $0x48] sm:$0xff] %v887
        %936 = vst [vmem:[#allocation2 + $0x50] sm:$0xff] %v888
        %937 = vst [vmem:[#allocation2 + $0x58] sm:$0xff] %v889
        %938 = vst [vmem:[#allocation2 + $0x60] sm:$0xff] %v890
        %939 = vst [vmem:[#allocation2 + $0x68] sm:$0xff] %v891
        %940 = vst [vmem:[#allocation2 + $0x70] sm:$0xff] %v892
        %941 = vst [vmem:[#allocation2 + $0x78] sm:$0xff] %v893
        %942 = vst [vmem:[#allocation2 + $0x80] sm:$0xff] %v894
        %943 = vst [vmem:[#allocation2 + $0x88] sm:$0xff] %v895
        %944 = vst [vmem:[#allocation2 + $0x90] sm:$0xff] %v896
        %945 = vst [vmem:[#allocation2 + $0x98] sm:$0xff] %v897
        %946 = vst [vmem:[#allocation2 + $0xa0] sm:$0xff] %v898
        %947 = vst [vmem:[#allocation2 + $0xa8] sm:$0xff] %v899
        %948 = vst [vmem:[#allocation2 + $0xb0] sm:$0xff] %v900
        %949 = vst [vmem:[#allocation2 + $0xb8] sm:$0xff] %v901
        %v950 = vld [vmem:[#allocation2] sm:$0xff]
        %v951 = vld [vmem:[#allocation2 + $0x10] sm:$0xff]
        %v952 = vld [vmem:[#allocation2 + $0x20] sm:$0xff]
        %v953 = vld [vmem:[#allocation2 + $0x30] sm:$0xff]
        %v954 = vld [vmem:[#allocation2 + $0x40] sm:$0xff]
        %v955 = vld [vmem:[#allocation2 + $0x50] sm:$0xff]
        %v956 = vld [vmem:[#allocation2 + $0x60] sm:$0xff]
        %v957 = vld [vmem:[#allocation2 + $0x70] sm:$0xff]
        %v958 = vld [vmem:[#allocation2 + $0x80] sm:$0xff]
        %v959 = vld [vmem:[#allocation2 + $0x90] sm:$0xff]
        %v960 = vld [vmem:[#allocation2 + $0xa0] sm:$0xff]
        %v961 = vld [vmem:[#allocation2 + $0xb0] sm:$0xff]
        %v966 = vunpack.c.l.b16 %v950
        %v967 = vunpack.c.h.b16 %v950
        %v968 = vunpack.c.l.b16 %v951
        %v969 = vunpack.c.h.b16 %v951
        %v970 = vunpack.c.l.b16 %v952
        %v971 = vunpack.c.h.b16 %v952
        %v972 = vunpack.c.l.b16 %v953
        %v973 = vunpack.c.h.b16 %v953
        %v974 = vpack.c.b16 %v968, %v966
        %v975 = vpack.c.b16 %v969, %v967
        %v976 = vpack.c.b16 %v972, %v970
        %v977 = vpack.c.b16 %v973, %v971
        %982 = vxpose.xlu0.c.b16.start [1/8] %v974, 128
        %983 = vxpose.xlu0.c.b16.cont [2/8] %v976, 128
        %984 = vxpose.xlu0.c.b16.cont [3/8] 0, 128
        %985 = vxpose.xlu0.c.b16.cont [4/8] 0, 128
        %986 = vxpose.xlu0.c.b16.cont [5/8] 0, 128
        %987 = vxpose.xlu0.c.b16.cont [6/8] 0, 128
        %988 = vxpose.xlu0.c.b16.cont [7/8] 0, 128
        %989 = vxpose.xlu0.c.b16.end [8/8] 0, 128
        %v990 = vpop.trf.xlu0
        %v991 = vpop.trf.xlu0
        %v992 = vpop.trf.xlu0
        %v993 = vpop.trf.xlu0
        %v994 = vpop.trf.xlu0
        %v995 = vpop.trf.xlu0
        %v996 = vpop.trf.xlu0
        %v997 = vpop.trf.xlu0
        %998 = vxpose.xlu0.c.b16.start [1/8] %v975, 128
        %999 = vxpose.xlu0.c.b16.cont [2/8] %v977, 128
        %1000 = vxpose.xlu0.c.b16.cont [3/8] 0, 128
        %1001 = vxpose.xlu0.c.b16.cont [4/8] 0, 128
        %1002 = vxpose.xlu0.c.b16.cont [5/8] 0, 128
        %1003 = vxpose.xlu0.c.b16.cont [6/8] 0, 128
        %1004 = vxpose.xlu0.c.b16.cont [7/8] 0, 128
        %1005 = vxpose.xlu0.c.b16.end [8/8] 0, 128
        %v1006 = vpop.trf.xlu0
        %v1007 = vpop.trf.xlu0
        %v1008 = vpop.trf.xlu0
        %v1009 = vpop.trf.xlu0
        %v1010 = vpop.trf.xlu0
        %v1011 = vpop.trf.xlu0
        %v1012 = vpop.trf.xlu0
        %v1013 = vpop.trf.xlu0
        %v1018 = vunpack.c.l.b16 %v954
        %v1019 = vunpack.c.h.b16 %v954
        %v1020 = vunpack.c.l.b16 %v955
        %v1021 = vunpack.c.h.b16 %v955
        %v1022 = vunpack.c.l.b16 %v956
        %v1023 = vunpack.c.h.b16 %v956
        %v1024 = vunpack.c.l.b16 %v957
        %v1025 = vunpack.c.h.b16 %v957
        %v1026 = vpack.c.b16 %v1020, %v1018
        %v1027 = vpack.c.b16 %v1021, %v1019
        %v1028 = vpack.c.b16 %v1024, %v1022
        %v1029 = vpack.c.b16 %v1025, %v1023
        %v1035 = vsel %vm577, %v990, 0
        %v1038 = vsel %vm577, %v991, 0
        %v1041 = vsel %vm577, %v992, 0
        %v1044 = vsel %vm577, %v993, 0
        %v1047 = vsel %vm577, %v994, 0
        %v1050 = vsel %vm577, %v995, 0
        %v1053 = vsel %vm577, %v996, 0
        %v1056 = vsel %vm577, %v997, 0
        %v1059 = vsel %vm577, %v1006, 0
        %v1062 = vsel %vm577, %v1007, 0
        %v1065 = vsel %vm577, %v1008, 0
        %v1068 = vsel %vm577, %v1009, 0
        %v1071 = vsel %vm577, %v1010, 0
        %v1074 = vsel %vm577, %v1011, 0
        %v1077 = vsel %vm577, %v1012, 0
        %v1080 = vsel %vm577, %v1013, 0
        %1082 = vmatprep.subr.bf16.mxu0 0
        %1083 = vmatpush1.bf16.msra.mxu0 0
        %1084 = vmatprep.subr.bf16.mxu0 0
        %1085 = vmatpush1.bf16.msra.mxu0 0
        %1086 = vmatprep.subr.bf16.mxu0 0
        %1087 = vmatpush1.bf16.msra.mxu0 0
        %1088 = vmatprep.subr.bf16.mxu0 0
        %1089 = vmatpush1.bf16.msra.mxu0 0
        %1090 = vmatprep.subr.bf16.mxu0 0
        %1091 = vmatpush1.bf16.msra.mxu0 0
        %1092 = vmatprep.subr.bf16.mxu0 0
        %1093 = vmatpush1.bf16.msra.mxu0 0
        %1094 = vmatprep.subr.bf16.mxu0 %v1029
        %1095 = vmatpush1.bf16.msra.mxu0 %v1028
        %1096 = vmatprep.subr.bf16.mxu0 %v1027
        %1097 = vmatpush1.bf16.msra.mxu0 %v1026
        %1098 = vmatprep.subr.bf16.mxu0 0
        %1099 = vmatpush2.bf16.msra.mxu0 0
        %1100 = vmatprep.subr.bf16.mxu0 0
        %1101 = vmatpush2.bf16.msra.mxu0 0
        %1102 = vmatprep.subr.bf16.mxu0 0
        %1103 = vmatpush2.bf16.msra.mxu0 0
        %1104 = vmatprep.subr.bf16.mxu0 0
        %1105 = vmatpush2.bf16.msra.mxu0 0
        %1106 = vmatprep.subr.bf16.mxu0 0
        %1107 = vmatpush2.bf16.msra.mxu0 0
        %1108 = vmatprep.subr.bf16.mxu0 0
        %1109 = vmatpush2.bf16.msra.mxu0 0
        %1110 = vmatprep.subr.bf16.mxu0 0
        %1111 = vmatpush2.bf16.msra.mxu0 0
        %1112 = vmatprep.subr.bf16.mxu0 0
        %1113 = vmatpush2.bf16.msra.mxu0 0
        %1114 = vmatprep.mubr.bf16.mxu0 0
        %1115 = vmatmul.mubr.bf16.gmra.mxu0 %v1035
        %v1116 = vpop.f32.mrf.mxu0
        %v1117 = vadd.f32 0.0, %v1116
        %v1118 = vpop.f32.mrf.mxu0
        %v1119 = vadd.f32 0.0, %v1118
        %v1120 = vpop.f32.mrf.mxu0
        %v1121 = vadd.f32 0.0, %v1120
        %v1122 = vpop.f32.mrf.mxu0
        %v1123 = vadd.f32 0.0, %v1122
        %1124 = vmatprep.mubr.bf16.mxu0 0
        %1125 = vmatmul.mubr.bf16.gmra.mxu0 %v1038
        %v1126 = vpop.f32.mrf.mxu0
        %v1127 = vadd.f32 0.0, %v1126
        %v1128 = vpop.f32.mrf.mxu0
        %v1129 = vadd.f32 0.0, %v1128
        %v1130 = vpop.f32.mrf.mxu0
        %v1131 = vadd.f32 0.0, %v1130
        %v1132 = vpop.f32.mrf.mxu0
        %v1133 = vadd.f32 0.0, %v1132
        %1134 = vmatprep.mubr.bf16.mxu0 0
        %1135 = vmatmul.mubr.bf16.gmra.mxu0 %v1041
        %v1136 = vpop.f32.mrf.mxu0
        %v1137 = vadd.f32 0.0, %v1136
        %v1138 = vpop.f32.mrf.mxu0
        %v1139 = vadd.f32 0.0, %v1138
        %v1140 = vpop.f32.mrf.mxu0
        %v1141 = vadd.f32 0.0, %v1140
        %v1142 = vpop.f32.mrf.mxu0
        %v1143 = vadd.f32 0.0, %v1142
        %1144 = vmatprep.mubr.bf16.mxu0 0
        %1145 = vmatmul.mubr.bf16.gmra.mxu0 %v1044
        %v1146 = vpop.f32.mrf.mxu0
        %v1147 = vadd.f32 0.0, %v1146
        %v1148 = vpop.f32.mrf.mxu0
        %v1149 = vadd.f32 0.0, %v1148
        %v1150 = vpop.f32.mrf.mxu0
        %v1151 = vadd.f32 0.0, %v1150
        %v1152 = vpop.f32.mrf.mxu0
        %v1153 = vadd.f32 0.0, %v1152
        %1154 = vmatprep.mubr.bf16.mxu0 0
        %1155 = vmatmul.mubr.bf16.gmra.mxu0 %v1047
        %v1156 = vpop.f32.mrf.mxu0
        %v1157 = vadd.f32 0.0, %v1156
        %v1158 = vpop.f32.mrf.mxu0
        %v1159 = vadd.f32 0.0, %v1158
        %v1160 = vpop.f32.mrf.mxu0
        %v1161 = vadd.f32 0.0, %v1160
        %v1162 = vpop.f32.mrf.mxu0
        %v1163 = vadd.f32 0.0, %v1162
        %1164 = vmatprep.mubr.bf16.mxu0 0
        %1165 = vmatmul.mubr.bf16.gmra.mxu0 %v1050
        %v1166 = vpop.f32.mrf.mxu0
        %v1167 = vadd.f32 0.0, %v1166
        %v1168 = vpop.f32.mrf.mxu0
        %v1169 = vadd.f32 0.0, %v1168
        %v1170 = vpop.f32.mrf.mxu0
        %v1171 = vadd.f32 0.0, %v1170
        %v1172 = vpop.f32.mrf.mxu0
        %v1173 = vadd.f32 0.0, %v1172
        %1174 = vmatprep.mubr.bf16.mxu0 0
        %1175 = vmatmul.mubr.bf16.gmra.mxu0 %v1053
        %v1176 = vpop.f32.mrf.mxu0
        %v1177 = vadd.f32 0.0, %v1176
        %v1178 = vpop.f32.mrf.mxu0
        %v1179 = vadd.f32 0.0, %v1178
        %v1180 = vpop.f32.mrf.mxu0
        %v1181 = vadd.f32 0.0, %v1180
        %v1182 = vpop.f32.mrf.mxu0
        %v1183 = vadd.f32 0.0, %v1182
        %1184 = vmatprep.mubr.bf16.mxu0 0
        %1185 = vmatmul.mubr.bf16.gmra.mxu0 %v1056
        %v1186 = vpop.f32.mrf.mxu0
        %v1187 = vadd.f32 0.0, %v1186
        %v1188 = vpop.f32.mrf.mxu0
        %v1189 = vadd.f32 0.0, %v1188
        %v1190 = vpop.f32.mrf.mxu0
        %v1191 = vadd.f32 0.0, %v1190
        %v1192 = vpop.f32.mrf.mxu0
        %v1193 = vadd.f32 0.0, %v1192
        %1194 = vmatprep.mubr.bf16.mxu0 0
        %1195 = vmatmul.mubr.bf16.gmra.mxu0 %v1059
        %v1196 = vpop.f32.mrf.mxu0
        %v1197 = vadd.f32 0.0, %v1196
        %v1198 = vpop.f32.mrf.mxu0
        %v1199 = vadd.f32 0.0, %v1198
        %v1200 = vpop.f32.mrf.mxu0
        %v1201 = vadd.f32 0.0, %v1200
        %v1202 = vpop.f32.mrf.mxu0
        %v1203 = vadd.f32 0.0, %v1202
        %1204 = vmatprep.mubr.bf16.mxu0 0
        %1205 = vmatmul.mubr.bf16.gmra.mxu0 %v1062
        %v1206 = vpop.f32.mrf.mxu0
        %v1207 = vadd.f32 0.0, %v1206
        %v1208 = vpop.f32.mrf.mxu0
        %v1209 = vadd.f32 0.0, %v1208
        %v1210 = vpop.f32.mrf.mxu0
        %v1211 = vadd.f32 0.0, %v1210
        %v1212 = vpop.f32.mrf.mxu0
        %v1213 = vadd.f32 0.0, %v1212
        %1214 = vmatprep.mubr.bf16.mxu0 0
        %1215 = vmatmul.mubr.bf16.gmra.mxu0 %v1065
        %v1216 = vpop.f32.mrf.mxu0
        %v1217 = vadd.f32 0.0, %v1216
        %v1218 = vpop.f32.mrf.mxu0
        %v1219 = vadd.f32 0.0, %v1218
        %v1220 = vpop.f32.mrf.mxu0
        %v1221 = vadd.f32 0.0, %v1220
        %v1222 = vpop.f32.mrf.mxu0
        %v1223 = vadd.f32 0.0, %v1222
        %1224 = vmatprep.mubr.bf16.mxu0 0
        %1225 = vmatmul.mubr.bf16.gmra.mxu0 %v1068
        %v1226 = vpop.f32.mrf.mxu0
        %v1227 = vadd.f32 0.0, %v1226
        %v1228 = vpop.f32.mrf.mxu0
        %v1229 = vadd.f32 0.0, %v1228
        %v1230 = vpop.f32.mrf.mxu0
        %v1231 = vadd.f32 0.0, %v1230
        %v1232 = vpop.f32.mrf.mxu0
        %v1233 = vadd.f32 0.0, %v1232
        %1234 = vmatprep.mubr.bf16.mxu0 0
        %1235 = vmatmul.mubr.bf16.gmra.mxu0 %v1071
        %v1236 = vpop.f32.mrf.mxu0
        %v1237 = vadd.f32 0.0, %v1236
        %v1238 = vpop.f32.mrf.mxu0
        %v1239 = vadd.f32 0.0, %v1238
        %v1240 = vpop.f32.mrf.mxu0
        %v1241 = vadd.f32 0.0, %v1240
        %v1242 = vpop.f32.mrf.mxu0
        %v1243 = vadd.f32 0.0, %v1242
        %1244 = vmatprep.mubr.bf16.mxu0 0
        %1245 = vmatmul.mubr.bf16.gmra.mxu0 %v1074
        %v1246 = vpop.f32.mrf.mxu0
        %v1247 = vadd.f32 0.0, %v1246
        %v1248 = vpop.f32.mrf.mxu0
        %v1249 = vadd.f32 0.0, %v1248
        %v1250 = vpop.f32.mrf.mxu0
        %v1251 = vadd.f32 0.0, %v1250
        %v1252 = vpop.f32.mrf.mxu0
        %v1253 = vadd.f32 0.0, %v1252
        %1254 = vmatprep.mubr.bf16.mxu0 0
        %1255 = vmatmul.mubr.bf16.gmra.mxu0 %v1077
        %v1256 = vpop.f32.mrf.mxu0
        %v1257 = vadd.f32 0.0, %v1256
        %v1258 = vpop.f32.mrf.mxu0
        %v1259 = vadd.f32 0.0, %v1258
        %v1260 = vpop.f32.mrf.mxu0
        %v1261 = vadd.f32 0.0, %v1260
        %v1262 = vpop.f32.mrf.mxu0
        %v1263 = vadd.f32 0.0, %v1262
        %1264 = vmatprep.mubr.bf16.mxu0 0
        %1265 = vmatmul.mubr.bf16.gmra.mxu0 %v1080
        %v1266 = vpop.f32.mrf.mxu0
        %v1267 = vadd.f32 0.0, %v1266
        %v1268 = vpop.f32.mrf.mxu0
        %v1269 = vadd.f32 0.0, %v1268
        %v1270 = vpop.f32.mrf.mxu0
        %v1271 = vadd.f32 0.0, %v1270
        %v1272 = vpop.f32.mrf.mxu0
        %v1273 = vadd.f32 0.0, %v1272
        %1274 = vdwg.mxu0
        %v1275 = vmax.f32 %v1117, %v1119
        %1276 = vmax.xlane.f32.xlu0 %v1275
        %v1277 = vpop.xlane.xlu0 %1276
        %v1278 = vmax.f32 %v1121, %v1123
        %1279 = vmax.xlane.f32.xlu0 %v1278
        %v1280 = vpop.xlane.xlu0 %1279
        %v1281 = vmax.f32 %v1127, %v1129
        %1282 = vmax.xlane.f32.xlu0 %v1281
        %v1283 = vpop.xlane.xlu0 %1282
        %v1284 = vmax.f32 %v1131, %v1133
        %1285 = vmax.xlane.f32.xlu0 %v1284
        %v1286 = vpop.xlane.xlu0 %1285
        %v1287 = vmax.f32 %v1137, %v1139
        %1288 = vmax.xlane.f32.xlu0 %v1287
        %v1289 = vpop.xlane.xlu0 %1288
        %v1290 = vmax.f32 %v1141, %v1143
        %1291 = vmax.xlane.f32.xlu0 %v1290
        %v1292 = vpop.xlane.xlu0 %1291
        %v1293 = vmax.f32 %v1147, %v1149
        %1294 = vmax.xlane.f32.xlu0 %v1293
        %v1295 = vpop.xlane.xlu0 %1294
        %v1296 = vmax.f32 %v1151, %v1153
        %1297 = vmax.xlane.f32.xlu0 %v1296
        %v1298 = vpop.xlane.xlu0 %1297
        %v1299 = vmax.f32 %v1157, %v1159
        %1300 = vmax.xlane.f32.xlu0 %v1299
        %v1301 = vpop.xlane.xlu0 %1300
        %v1302 = vmax.f32 %v1161, %v1163
        %1303 = vmax.xlane.f32.xlu0 %v1302
        %v1304 = vpop.xlane.xlu0 %1303
        %v1305 = vmax.f32 %v1167, %v1169
        %1306 = vmax.xlane.f32.xlu0 %v1305
        %v1307 = vpop.xlane.xlu0 %1306
        %v1308 = vmax.f32 %v1171, %v1173
        %1309 = vmax.xlane.f32.xlu0 %v1308
        %v1310 = vpop.xlane.xlu0 %1309
        %v1311 = vmax.f32 %v1177, %v1179
        %1312 = vmax.xlane.f32.xlu0 %v1311
        %v1313 = vpop.xlane.xlu0 %1312
        %v1314 = vmax.f32 %v1181, %v1183
        %1315 = vmax.xlane.f32.xlu0 %v1314
        %v1316 = vpop.xlane.xlu0 %1315
        %v1317 = vmax.f32 %v1187, %v1189
        %1318 = vmax.xlane.f32.xlu0 %v1317
        %v1319 = vpop.xlane.xlu0 %1318
        %v1320 = vmax.f32 %v1191, %v1193
        %1321 = vmax.xlane.f32.xlu0 %v1320
        %v1322 = vpop.xlane.xlu0 %1321
        %v1323 = vmax.f32 %v1197, %v1199
        %1324 = vmax.xlane.f32.xlu0 %v1323
        %v1325 = vpop.xlane.xlu0 %1324
        %v1326 = vmax.f32 %v1201, %v1203
        %1327 = vmax.xlane.f32.xlu0 %v1326
        %v1328 = vpop.xlane.xlu0 %1327
        %v1329 = vmax.f32 %v1207, %v1209
        %1330 = vmax.xlane.f32.xlu0 %v1329
        %v1331 = vpop.xlane.xlu0 %1330
        %v1332 = vmax.f32 %v1211, %v1213
        %1333 = vmax.xlane.f32.xlu0 %v1332
        %v1334 = vpop.xlane.xlu0 %1333
        %v1335 = vmax.f32 %v1217, %v1219
        %1336 = vmax.xlane.f32.xlu0 %v1335
        %v1337 = vpop.xlane.xlu0 %1336
        %v1338 = vmax.f32 %v1221, %v1223
        %1339 = vmax.xlane.f32.xlu0 %v1338
        %v1340 = vpop.xlane.xlu0 %1339
        %v1341 = vmax.f32 %v1227, %v1229
        %1342 = vmax.xlane.f32.xlu0 %v1341
        %v1343 = vpop.xlane.xlu0 %1342
        %v1344 = vmax.f32 %v1231, %v1233
        %1345 = vmax.xlane.f32.xlu0 %v1344
        %v1346 = vpop.xlane.xlu0 %1345
        %v1347 = vmax.f32 %v1237, %v1239
        %1348 = vmax.xlane.f32.xlu0 %v1347
        %v1349 = vpop.xlane.xlu0 %1348
        %v1350 = vmax.f32 %v1241, %v1243
        %1351 = vmax.xlane.f32.xlu0 %v1350
        %v1352 = vpop.xlane.xlu0 %1351
        %v1353 = vmax.f32 %v1247, %v1249
        %1354 = vmax.xlane.f32.xlu0 %v1353
        %v1355 = vpop.xlane.xlu0 %1354
        %v1356 = vmax.f32 %v1251, %v1253
        %1357 = vmax.xlane.f32.xlu0 %v1356
        %v1358 = vpop.xlane.xlu0 %1357
        %v1359 = vmax.f32 %v1257, %v1259
        %1360 = vmax.xlane.f32.xlu0 %v1359
        %v1361 = vpop.xlane.xlu0 %1360
        %v1362 = vmax.f32 %v1261, %v1263
        %1363 = vmax.xlane.f32.xlu0 %v1362
        %v1364 = vpop.xlane.xlu0 %1363
        %v1365 = vmax.f32 %v1267, %v1269
        %1366 = vmax.xlane.f32.xlu0 %v1365
        %v1367 = vpop.xlane.xlu0 %1366
        %v1368 = vmax.f32 %v1271, %v1273
        %1369 = vmax.xlane.f32.xlu0 %v1368
        %v1370 = vpop.xlane.xlu0 %1369
        %v1371 = vsub.f32 %v1117, %v1277
        %v1372 = vsub.f32 %v1119, %v1277
        %v1373 = vsub.f32 %v1121, %v1280
        %v1374 = vsub.f32 %v1123, %v1280
        %v1375 = vsub.f32 %v1127, %v1283
        %v1376 = vsub.f32 %v1129, %v1283
        %v1377 = vsub.f32 %v1131, %v1286
        %v1378 = vsub.f32 %v1133, %v1286
        %v1379 = vsub.f32 %v1137, %v1289
        %v1380 = vsub.f32 %v1139, %v1289
        %v1381 = vsub.f32 %v1141, %v1292
        %v1382 = vsub.f32 %v1143, %v1292
        %v1383 = vsub.f32 %v1147, %v1295
        %v1384 = vsub.f32 %v1149, %v1295
        %v1385 = vsub.f32 %v1151, %v1298
        %v1386 = vsub.f32 %v1153, %v1298
        %v1387 = vsub.f32 %v1157, %v1301
        %v1388 = vsub.f32 %v1159, %v1301
        %v1389 = vsub.f32 %v1161, %v1304
        %v1390 = vsub.f32 %v1163, %v1304
        %v1391 = vsub.f32 %v1167, %v1307
        %v1392 = vsub.f32 %v1169, %v1307
        %v1393 = vsub.f32 %v1171, %v1310
        %v1394 = vsub.f32 %v1173, %v1310
        %v1395 = vsub.f32 %v1177, %v1313
        %v1396 = vsub.f32 %v1179, %v1313
        %v1397 = vsub.f32 %v1181, %v1316
        %v1398 = vsub.f32 %v1183, %v1316
        %v1399 = vsub.f32 %v1187, %v1319
        %v1400 = vsub.f32 %v1189, %v1319
        %v1401 = vsub.f32 %v1191, %v1322
        %v1402 = vsub.f32 %v1193, %v1322
        %v1403 = vsub.f32 %v1197, %v1325
        %v1404 = vsub.f32 %v1199, %v1325
        %v1405 = vsub.f32 %v1201, %v1328
        %v1406 = vsub.f32 %v1203, %v1328
        %v1407 = vsub.f32 %v1207, %v1331
        %v1408 = vsub.f32 %v1209, %v1331
        %v1409 = vsub.f32 %v1211, %v1334
        %v1410 = vsub.f32 %v1213, %v1334
        %v1411 = vsub.f32 %v1217, %v1337
        %v1412 = vsub.f32 %v1219, %v1337
        %v1413 = vsub.f32 %v1221, %v1340
        %v1414 = vsub.f32 %v1223, %v1340
        %v1415 = vsub.f32 %v1227, %v1343
        %v1416 = vsub.f32 %v1229, %v1343
        %v1417 = vsub.f32 %v1231, %v1346
        %v1418 = vsub.f32 %v1233, %v1346
        %v1419 = vsub.f32 %v1237, %v1349
        %v1420 = vsub.f32 %v1239, %v1349
        %v1421 = vsub.f32 %v1241, %v1352
        %v1422 = vsub.f32 %v1243, %v1352
        %v1423 = vsub.f32 %v1247, %v1355
        %v1424 = vsub.f32 %v1249, %v1355
        %v1425 = vsub.f32 %v1251, %v1358
        %v1426 = vsub.f32 %v1253, %v1358
        %v1427 = vsub.f32 %v1257, %v1361
        %v1428 = vsub.f32 %v1259, %v1361
        %v1429 = vsub.f32 %v1261, %v1364
        %v1430 = vsub.f32 %v1263, %v1364
        %v1431 = vsub.f32 %v1267, %v1367
        %v1432 = vsub.f32 %v1269, %v1367
        %v1433 = vsub.f32 %v1271, %v1370
        %v1434 = vsub.f32 %v1273, %v1370
        %v1435 = vmul.f32 %v1371, 1.442695
        %v1436 = vpow.pop %v1435
        %v1437 = vmul.f32 %v1372, 1.442695
        %v1438 = vpow.pop %v1437
        %v1439 = vmul.f32 %v1373, 1.442695
        %v1440 = vpow.pop %v1439
        %v1441 = vmul.f32 %v1374, 1.442695
        %v1442 = vpow.pop %v1441
        %v1443 = vmul.f32 %v1375, 1.442695
        %v1444 = vpow.pop %v1443
        %v1445 = vmul.f32 %v1376, 1.442695
        %v1446 = vpow.pop %v1445
        %v1447 = vmul.f32 %v1377, 1.442695
        %v1448 = vpow.pop %v1447
        %v1449 = vmul.f32 %v1378, 1.442695
        %v1450 = vpow.pop %v1449
        %v1451 = vmul.f32 %v1379, 1.442695
        %v1452 = vpow.pop %v1451
        %v1453 = vmul.f32 %v1380, 1.442695
        %v1454 = vpow.pop %v1453
        %v1455 = vmul.f32 %v1381, 1.442695
        %v1456 = vpow.pop %v1455
        %v1457 = vmul.f32 %v1382, 1.442695
        %v1458 = vpow.pop %v1457
        %v1459 = vmul.f32 %v1383, 1.442695
        %v1460 = vpow.pop %v1459
        %v1461 = vmul.f32 %v1384, 1.442695
        %v1462 = vpow.pop %v1461
        %v1463 = vmul.f32 %v1385, 1.442695
        %v1464 = vpow.pop %v1463
        %v1465 = vmul.f32 %v1386, 1.442695
        %v1466 = vpow.pop %v1465
        %v1467 = vmul.f32 %v1387, 1.442695
        %v1468 = vpow.pop %v1467
        %v1469 = vmul.f32 %v1388, 1.442695
        %v1470 = vpow.pop %v1469
        %v1471 = vmul.f32 %v1389, 1.442695
        %v1472 = vpow.pop %v1471
        %v1473 = vmul.f32 %v1390, 1.442695
        %v1474 = vpow.pop %v1473
        %v1475 = vmul.f32 %v1391, 1.442695
        %v1476 = vpow.pop %v1475
        %v1477 = vmul.f32 %v1392, 1.442695
        %v1478 = vpow.pop %v1477
        %v1479 = vmul.f32 %v1393, 1.442695
        %v1480 = vpow.pop %v1479
        %v1481 = vmul.f32 %v1394, 1.442695
        %v1482 = vpow.pop %v1481
        %v1483 = vmul.f32 %v1395, 1.442695
        %v1484 = vpow.pop %v1483
        %v1485 = vmul.f32 %v1396, 1.442695
        %v1486 = vpow.pop %v1485
        %v1487 = vmul.f32 %v1397, 1.442695
        %v1488 = vpow.pop %v1487
        %v1489 = vmul.f32 %v1398, 1.442695
        %v1490 = vpow.pop %v1489
        %v1491 = vmul.f32 %v1399, 1.442695
        %v1492 = vpow.pop %v1491
        %v1493 = vmul.f32 %v1400, 1.442695
        %v1494 = vpow.pop %v1493
        %v1495 = vmul.f32 %v1401, 1.442695
        %v1496 = vpow.pop %v1495
        %v1497 = vmul.f32 %v1402, 1.442695
        %v1498 = vpow.pop %v1497
        %v1499 = vmul.f32 %v1403, 1.442695
        %v1500 = vpow.pop %v1499
        %v1501 = vmul.f32 %v1404, 1.442695
        %v1502 = vpow.pop %v1501
        %v1503 = vmul.f32 %v1405, 1.442695
        %v1504 = vpow.pop %v1503
        %v1505 = vmul.f32 %v1406, 1.442695
        %v1506 = vpow.pop %v1505
        %v1507 = vmul.f32 %v1407, 1.442695
        %v1508 = vpow.pop %v1507
        %v1509 = vmul.f32 %v1408, 1.442695
        %v1510 = vpow.pop %v1509
        %v1511 = vmul.f32 %v1409, 1.442695
        %v1512 = vpow.pop %v1511
        %v1513 = vmul.f32 %v1410, 1.442695
        %v1514 = vpow.pop %v1513
        %v1515 = vmul.f32 %v1411, 1.442695
        %v1516 = vpow.pop %v1515
        %v1517 = vmul.f32 %v1412, 1.442695
        %v1518 = vpow.pop %v1517
        %v1519 = vmul.f32 %v1413, 1.442695
        %v1520 = vpow.pop %v1519
        %v1521 = vmul.f32 %v1414, 1.442695
        %v1522 = vpow.pop %v1521
        %v1523 = vmul.f32 %v1415, 1.442695
        %v1524 = vpow.pop %v1523
        %v1525 = vmul.f32 %v1416, 1.442695
        %v1526 = vpow.pop %v1525
        %v1527 = vmul.f32 %v1417, 1.442695
        %v1528 = vpow.pop %v1527
        %v1529 = vmul.f32 %v1418, 1.442695
        %v1530 = vpow.pop %v1529
        %v1531 = vmul.f32 %v1419, 1.442695
        %v1532 = vpow.pop %v1531
        %v1533 = vmul.f32 %v1420, 1.442695
        %v1534 = vpow.pop %v1533
        %v1535 = vmul.f32 %v1421, 1.442695
        %v1536 = vpow.pop %v1535
        %v1537 = vmul.f32 %v1422, 1.442695
        %v1538 = vpow.pop %v1537
        %v1539 = vmul.f32 %v1423, 1.442695
        %v1540 = vpow.pop %v1539
        %v1541 = vmul.f32 %v1424, 1.442695
        %v1542 = vpow.pop %v1541
        %v1543 = vmul.f32 %v1425, 1.442695
        %v1544 = vpow.pop %v1543
        %v1545 = vmul.f32 %v1426, 1.442695
        %v1546 = vpow.pop %v1545
        %v1547 = vmul.f32 %v1427, 1.442695
        %v1548 = vpow.pop %v1547
        %v1549 = vmul.f32 %v1428, 1.442695
        %v1550 = vpow.pop %v1549
        %v1551 = vmul.f32 %v1429, 1.442695
        %v1552 = vpow.pop %v1551
        %v1553 = vmul.f32 %v1430, 1.442695
        %v1554 = vpow.pop %v1553
        %v1555 = vmul.f32 %v1431, 1.442695
        %v1556 = vpow.pop %v1555
        %v1557 = vmul.f32 %v1432, 1.442695
        %v1558 = vpow.pop %v1557
        %v1559 = vmul.f32 %v1433, 1.442695
        %v1560 = vpow.pop %v1559
        %v1561 = vmul.f32 %v1434, 1.442695
        %v1562 = vpow.pop %v1561
        %v1563 = vadd.f32 %v1436, %v1438
        %1564 = vadd.xlane.f32.xlu0 %v1563
        %v1565 = vpop.xlane.xlu0 %1564
        %v1566 = vadd.f32 %v1440, %v1442
        %1567 = vadd.xlane.f32.xlu0 %v1566
        %v1568 = vpop.xlane.xlu0 %1567
        %v1569 = vadd.f32 %v1444, %v1446
        %1570 = vadd.xlane.f32.xlu0 %v1569
        %v1571 = vpop.xlane.xlu0 %1570
        %v1572 = vadd.f32 %v1448, %v1450
        %1573 = vadd.xlane.f32.xlu0 %v1572
        %v1574 = vpop.xlane.xlu0 %1573
        %v1575 = vadd.f32 %v1452, %v1454
        %1576 = vadd.xlane.f32.xlu0 %v1575
        %v1577 = vpop.xlane.xlu0 %1576
        %v1578 = vadd.f32 %v1456, %v1458
        %1579 = vadd.xlane.f32.xlu0 %v1578
        %v1580 = vpop.xlane.xlu0 %1579
        %v1581 = vadd.f32 %v1460, %v1462
        %1582 = vadd.xlane.f32.xlu0 %v1581
        %v1583 = vpop.xlane.xlu0 %1582
        %v1584 = vadd.f32 %v1464, %v1466
        %1585 = vadd.xlane.f32.xlu0 %v1584
        %v1586 = vpop.xlane.xlu0 %1585
        %v1587 = vadd.f32 %v1468, %v1470
        %1588 = vadd.xlane.f32.xlu0 %v1587
        %v1589 = vpop.xlane.xlu0 %1588
        %v1590 = vadd.f32 %v1472, %v1474
        %1591 = vadd.xlane.f32.xlu0 %v1590
        %v1592 = vpop.xlane.xlu0 %1591
        %v1593 = vadd.f32 %v1476, %v1478
        %1594 = vadd.xlane.f32.xlu0 %v1593
        %v1595 = vpop.xlane.xlu0 %1594
        %v1596 = vadd.f32 %v1480, %v1482
        %1597 = vadd.xlane.f32.xlu0 %v1596
        %v1598 = vpop.xlane.xlu0 %1597
        %v1599 = vadd.f32 %v1484, %v1486
        %1600 = vadd.xlane.f32.xlu0 %v1599
        %v1601 = vpop.xlane.xlu0 %1600
        %v1602 = vadd.f32 %v1488, %v1490
        %1603 = vadd.xlane.f32.xlu0 %v1602
        %v1604 = vpop.xlane.xlu0 %1603
        %v1605 = vadd.f32 %v1492, %v1494
        %1606 = vadd.xlane.f32.xlu0 %v1605
        %v1607 = vpop.xlane.xlu0 %1606
        %v1608 = vadd.f32 %v1496, %v1498
        %1609 = vadd.xlane.f32.xlu0 %v1608
        %v1610 = vpop.xlane.xlu0 %1609
        %v1611 = vadd.f32 %v1500, %v1502
        %1612 = vadd.xlane.f32.xlu0 %v1611
        %v1613 = vpop.xlane.xlu0 %1612
        %v1614 = vadd.f32 %v1504, %v1506
        %1615 = vadd.xlane.f32.xlu0 %v1614
        %v1616 = vpop.xlane.xlu0 %1615
        %v1617 = vadd.f32 %v1508, %v1510
        %1618 = vadd.xlane.f32.xlu0 %v1617
        %v1619 = vpop.xlane.xlu0 %1618
        %v1620 = vadd.f32 %v1512, %v1514
        %1621 = vadd.xlane.f32.xlu0 %v1620
        %v1622 = vpop.xlane.xlu0 %1621
        %v1623 = vadd.f32 %v1516, %v1518
        %1624 = vadd.xlane.f32.xlu0 %v1623
        %v1625 = vpop.xlane.xlu0 %1624
        %v1626 = vadd.f32 %v1520, %v1522
        %1627 = vadd.xlane.f32.xlu0 %v1626
        %v1628 = vpop.xlane.xlu0 %1627
        %v1629 = vadd.f32 %v1524, %v1526
        %1630 = vadd.xlane.f32.xlu0 %v1629
        %v1631 = vpop.xlane.xlu0 %1630
        %v1632 = vadd.f32 %v1528, %v1530
        %1633 = vadd.xlane.f32.xlu0 %v1632
        %v1634 = vpop.xlane.xlu0 %1633
        %v1635 = vadd.f32 %v1532, %v1534
        %1636 = vadd.xlane.f32.xlu0 %v1635
        %v1637 = vpop.xlane.xlu0 %1636
        %v1638 = vadd.f32 %v1536, %v1538
        %1639 = vadd.xlane.f32.xlu0 %v1638
        %v1640 = vpop.xlane.xlu0 %1639
        %v1641 = vadd.f32 %v1540, %v1542
        %1642 = vadd.xlane.f32.xlu0 %v1641
        %v1643 = vpop.xlane.xlu0 %1642
        %v1644 = vadd.f32 %v1544, %v1546
        %1645 = vadd.xlane.f32.xlu0 %v1644
        %v1646 = vpop.xlane.xlu0 %1645
        %v1647 = vadd.f32 %v1548, %v1550
        %1648 = vadd.xlane.f32.xlu0 %v1647
        %v1649 = vpop.xlane.xlu0 %1648
        %v1650 = vadd.f32 %v1552, %v1554
        %1651 = vadd.xlane.f32.xlu0 %v1650
        %v1652 = vpop.xlane.xlu0 %1651
        %v1653 = vadd.f32 %v1556, %v1558
        %1654 = vadd.xlane.f32.xlu0 %v1653
        %v1655 = vpop.xlane.xlu0 %1654
        %v1656 = vadd.f32 %v1560, %v1562
        %1657 = vadd.xlane.f32.xlu0 %v1656
        %v1658 = vpop.xlane.xlu0 %1657
        %v1659 = vrcp.pop %v1565
        %v1660 = vrcp.pop %v1568
        %v1661 = vrcp.pop %v1571
        %v1662 = vrcp.pop %v1574
        %v1663 = vrcp.pop %v1577
        %v1664 = vrcp.pop %v1580
        %v1665 = vrcp.pop %v1583
        %v1666 = vrcp.pop %v1586
        %v1667 = vrcp.pop %v1589
        %v1668 = vrcp.pop %v1592
        %v1669 = vrcp.pop %v1595
        %v1670 = vrcp.pop %v1598
        %v1671 = vrcp.pop %v1601
        %v1672 = vrcp.pop %v1604
        %v1673 = vrcp.pop %v1607
        %v1674 = vrcp.pop %v1610
        %v1675 = vrcp.pop %v1613
        %v1676 = vrcp.pop %v1616
        %v1677 = vrcp.pop %v1619
        %v1678 = vrcp.pop %v1622
        %v1679 = vrcp.pop %v1625
        %v1680 = vrcp.pop %v1628
        %v1681 = vrcp.pop %v1631
        %v1682 = vrcp.pop %v1634
        %v1683 = vrcp.pop %v1637
        %v1684 = vrcp.pop %v1640
        %v1685 = vrcp.pop %v1643
        %v1686 = vrcp.pop %v1646
        %v1687 = vrcp.pop %v1649
        %v1688 = vrcp.pop %v1652
        %v1689 = vrcp.pop %v1655
        %v1690 = vrcp.pop %v1658
        %v1691 = vmul.f32 %v1436, %v1659
        %v1692 = vmul.f32 %v1438, %v1659
        %v1693 = vmul.f32 %v1440, %v1660
        %v1694 = vmul.f32 %v1442, %v1660
        %v1695 = vmul.f32 %v1444, %v1661
        %v1696 = vmul.f32 %v1446, %v1661
        %v1697 = vmul.f32 %v1448, %v1662
        %v1698 = vmul.f32 %v1450, %v1662
        %v1699 = vmul.f32 %v1452, %v1663
        %v1700 = vmul.f32 %v1454, %v1663
        %v1701 = vmul.f32 %v1456, %v1664
        %v1702 = vmul.f32 %v1458, %v1664
        %v1703 = vmul.f32 %v1460, %v1665
        %v1704 = vmul.f32 %v1462, %v1665
        %v1705 = vmul.f32 %v1464, %v1666
        %v1706 = vmul.f32 %v1466, %v1666
        %v1707 = vmul.f32 %v1468, %v1667
        %v1708 = vmul.f32 %v1470, %v1667
        %v1709 = vmul.f32 %v1472, %v1668
        %v1710 = vmul.f32 %v1474, %v1668
        %v1711 = vmul.f32 %v1476, %v1669
        %v1712 = vmul.f32 %v1478, %v1669
        %v1713 = vmul.f32 %v1480, %v1670
        %v1714 = vmul.f32 %v1482, %v1670
        %v1715 = vmul.f32 %v1484, %v1671
        %v1716 = vmul.f32 %v1486, %v1671
        %v1717 = vmul.f32 %v1488, %v1672
        %v1718 = vmul.f32 %v1490, %v1672
        %v1719 = vmul.f32 %v1492, %v1673
        %v1720 = vmul.f32 %v1494, %v1673
        %v1721 = vmul.f32 %v1496, %v1674
        %v1722 = vmul.f32 %v1498, %v1674
        %v1723 = vmul.f32 %v1500, %v1675
        %v1724 = vmul.f32 %v1502, %v1675
        %v1725 = vmul.f32 %v1504, %v1676
        %v1726 = vmul.f32 %v1506, %v1676
        %v1727 = vmul.f32 %v1508, %v1677
        %v1728 = vmul.f32 %v1510, %v1677
        %v1729 = vmul.f32 %v1512, %v1678
        %v1730 = vmul.f32 %v1514, %v1678
        %v1731 = vmul.f32 %v1516, %v1679
        %v1732 = vmul.f32 %v1518, %v1679
        %v1733 = vmul.f32 %v1520, %v1680
        %v1734 = vmul.f32 %v1522, %v1680
        %v1735 = vmul.f32 %v1524, %v1681
        %v1736 = vmul.f32 %v1526, %v1681
        %v1737 = vmul.f32 %v1528, %v1682
        %v1738 = vmul.f32 %v1530, %v1682
        %v1739 = vmul.f32 %v1532, %v1683
        %v1740 = vmul.f32 %v1534, %v1683
        %v1741 = vmul.f32 %v1536, %v1684
        %v1742 = vmul.f32 %v1538, %v1684
        %v1743 = vmul.f32 %v1540, %v1685
        %v1744 = vmul.f32 %v1542, %v1685
        %v1745 = vmul.f32 %v1544, %v1686
        %v1746 = vmul.f32 %v1546, %v1686
        %v1747 = vmul.f32 %v1548, %v1687
        %v1748 = vmul.f32 %v1550, %v1687
        %v1749 = vmul.f32 %v1552, %v1688
        %v1750 = vmul.f32 %v1554, %v1688
        %v1751 = vmul.f32 %v1556, %v1689
        %v1752 = vmul.f32 %v1558, %v1689
        %v1753 = vmul.f32 %v1560, %v1690
        %v1754 = vmul.f32 %v1562, %v1690
        %v1755 = vpack.c.bf16 %v1693, %v1691
        %v1756 = vpack.c.bf16 %v1694, %v1692
        %v1757 = vpack.c.bf16 %v1697, %v1695
        %v1758 = vpack.c.bf16 %v1698, %v1696
        %v1759 = vpack.c.bf16 %v1701, %v1699
        %v1760 = vpack.c.bf16 %v1702, %v1700
        %v1761 = vpack.c.bf16 %v1705, %v1703
        %v1762 = vpack.c.bf16 %v1706, %v1704
        %v1763 = vpack.c.bf16 %v1709, %v1707
        %v1764 = vpack.c.bf16 %v1710, %v1708
        %v1765 = vpack.c.bf16 %v1713, %v1711
        %v1766 = vpack.c.bf16 %v1714, %v1712
        %v1767 = vpack.c.bf16 %v1717, %v1715
        %v1768 = vpack.c.bf16 %v1718, %v1716
        %v1769 = vpack.c.bf16 %v1721, %v1719
        %v1770 = vpack.c.bf16 %v1722, %v1720
        %v1771 = vpack.c.bf16 %v1725, %v1723
        %v1772 = vpack.c.bf16 %v1726, %v1724
        %v1773 = vpack.c.bf16 %v1729, %v1727
        %v1774 = vpack.c.bf16 %v1730, %v1728
        %v1775 = vpack.c.bf16 %v1733, %v1731
        %v1776 = vpack.c.bf16 %v1734, %v1732
        %v1777 = vpack.c.bf16 %v1737, %v1735
        %v1778 = vpack.c.bf16 %v1738, %v1736
        %v1779 = vpack.c.bf16 %v1741, %v1739
        %v1780 = vpack.c.bf16 %v1742, %v1740
        %v1781 = vpack.c.bf16 %v1745, %v1743
        %v1782 = vpack.c.bf16 %v1746, %v1744
        %v1783 = vpack.c.bf16 %v1749, %v1747
        %v1784 = vpack.c.bf16 %v1750, %v1748
        %v1785 = vpack.c.bf16 %v1753, %v1751
        %v1786 = vpack.c.bf16 %v1754, %v1752
        %v1791 = vunpack.c.l.b16 %v958
        %v1792 = vunpack.c.h.b16 %v958
        %v1793 = vunpack.c.l.b16 %v959
        %v1794 = vunpack.c.h.b16 %v959
        %v1795 = vunpack.c.l.b16 %v960
        %v1796 = vunpack.c.h.b16 %v960
        %v1797 = vunpack.c.l.b16 %v961
        %v1798 = vunpack.c.h.b16 %v961
        %v1799 = vpack.c.b16 %v1793, %v1791
        %v1800 = vpack.c.b16 %v1794, %v1792
        %v1801 = vpack.c.b16 %v1797, %v1795
        %v1802 = vpack.c.b16 %v1798, %v1796
        %1807 = vmatprep.subr.bf16.mxu0 %v1770
        %1808 = vmatpush1.bf16.xpose.msra.mxu0 %v1769
        %1809 = vmatprep.subr.bf16.mxu0 %v1768
        %1810 = vmatpush1.bf16.xpose.msra.mxu0 %v1767
        %1811 = vmatprep.subr.bf16.mxu0 %v1766
        %1812 = vmatpush1.bf16.xpose.msra.mxu0 %v1765
        %1813 = vmatprep.subr.bf16.mxu0 %v1764
        %1814 = vmatpush1.bf16.xpose.msra.mxu0 %v1763
        %1815 = vmatprep.subr.bf16.mxu0 %v1762
        %1816 = vmatpush1.bf16.xpose.msra.mxu0 %v1761
        %1817 = vmatprep.subr.bf16.mxu0 %v1760
        %1818 = vmatpush1.bf16.xpose.msra.mxu0 %v1759
        %1819 = vmatprep.subr.bf16.mxu0 %v1758
        %1820 = vmatpush1.bf16.xpose.msra.mxu0 %v1757
        %1821 = vmatprep.subr.bf16.mxu0 %v1756
        %1822 = vmatpush1.bf16.xpose.msra.mxu0 %v1755
        %1823 = vmatprep.subr.bf16.mxu0 %v1786
        %1824 = vmatpush2.bf16.xpose.msra.mxu0 %v1785
        %1825 = vmatprep.subr.bf16.mxu0 %v1784
        %1826 = vmatpush2.bf16.xpose.msra.mxu0 %v1783
        %1827 = vmatprep.subr.bf16.mxu0 %v1782
        %1828 = vmatpush2.bf16.xpose.msra.mxu0 %v1781
        %1829 = vmatprep.subr.bf16.mxu0 %v1780
        %1830 = vmatpush2.bf16.xpose.msra.mxu0 %v1779
        %1831 = vmatprep.subr.bf16.mxu0 %v1778
        %1832 = vmatpush2.bf16.xpose.msra.mxu0 %v1777
        %1833 = vmatprep.subr.bf16.mxu0 %v1776
        %1834 = vmatpush2.bf16.xpose.msra.mxu0 %v1775
        %1835 = vmatprep.subr.bf16.mxu0 %v1774
        %1836 = vmatpush2.bf16.xpose.msra.mxu0 %v1773
        %1837 = vmatprep.subr.bf16.mxu0 %v1772
        %1838 = vmatpush2.bf16.xpose.msra.mxu0 %v1771
        %1839 = vmatprep.mubr.bf16.mxu0 %v1800
        %1840 = vmatmul.mubr.bf16.gmra.mxu0 %v1799
        %v1841 = vpop.f32.mrf.mxu0
        %v1842 = vadd.f32 0.0, %v1841
        %v1843 = vpop.f32.mrf.mxu0
        %v1844 = vadd.f32 0.0, %v1843
        %v1845 = vpop.f32.mrf.mxu0
        %v1846 = vadd.f32 0.0, %v1845
        %v1847 = vpop.f32.mrf.mxu0
        %v1848 = vadd.f32 0.0, %v1847
        %1849 = vmatprep.mubr.bf16.mxu0 %v1802
        %1850 = vmatmul.mubr.bf16.gmra.mxu0 %v1801
        %v1851 = vpop.f32.mrf.mxu0
        %v1852 = vadd.f32 0.0, %v1851
        %v1853 = vpop.f32.mrf.mxu0
        %v1854 = vadd.f32 0.0, %v1853
        %v1855 = vpop.f32.mrf.mxu0
        %v1856 = vadd.f32 0.0, %v1855
        %v1857 = vpop.f32.mrf.mxu0
        %v1858 = vadd.f32 0.0, %v1857
        %1859 = vdwg.mxu0
        %v1860 = vpack.c.bf16 %v1846, %v1842
        %v1861 = vpack.c.bf16 %v1848, %v1844
        %v1862 = vpack.c.bf16 %v1856, %v1852
        %v1863 = vpack.c.bf16 %v1858, %v1854
        %v1868 = vunpack.c.l.b16 %v1860
        %v1869 = vunpack.c.l.b16 %v1861
        %v1870 = vunpack.c.h.b16 %v1860
        %v1871 = vunpack.c.h.b16 %v1861
        %v1872 = vunpack.c.l.b16 %v1862
        %v1873 = vunpack.c.l.b16 %v1863
        %v1874 = vunpack.c.h.b16 %v1862
        %v1875 = vunpack.c.h.b16 %v1863
        %v1876 = vpack.c.b16 %v1869, %v1868
        %v1877 = vpack.c.b16 %v1871, %v1870
        %v1878 = vpack.c.b16 %v1873, %v1872
        %v1879 = vpack.c.b16 %v1875, %v1874
        %1884 = vst [vmem:[#allocation3] sm:$0xff] %v1876
        %1885 = vst [vmem:[#allocation3 + $0x10] sm:$0xff] %v1877
        %1886 = vst [vmem:[#allocation3 + $0x20] sm:$0xff] %v1878
        %1887 = vst [vmem:[#allocation3 + $0x30] sm:$0xff] %v1879
        %s1888 = scalar_lea.vmem [#allocation2], 8
        %v1889 = vld [vmem:[%s1888] sm:$0xff]
        %v1890 = vld [vmem:[%s1888 + $0x10] sm:$0xff]
        %v1891 = vld [vmem:[%s1888 + $0x20] sm:$0xff]
        %v1892 = vld [vmem:[%s1888 + $0x30] sm:$0xff]
        %v1893 = vld [vmem:[%s1888 + $0x40] sm:$0xff]
        %v1894 = vld [vmem:[%s1888 + $0x50] sm:$0xff]
        %v1895 = vld [vmem:[%s1888 + $0x60] sm:$0xff]
        %v1896 = vld [vmem:[%s1888 + $0x70] sm:$0xff]
        %v1897 = vld [vmem:[%s1888 + $0x80] sm:$0xff]
        %v1898 = vld [vmem:[%s1888 + $0x90] sm:$0xff]
        %v1899 = vld [vmem:[%s1888 + $0xa0] sm:$0xff]
        %v1900 = vld [vmem:[%s1888 + $0xb0] sm:$0xff]
        %v1905 = vunpack.c.l.b16 %v1889
        %v1906 = vunpack.c.h.b16 %v1889
        %v1907 = vunpack.c.l.b16 %v1890
        %v1908 = vunpack.c.h.b16 %v1890
        %v1909 = vunpack.c.l.b16 %v1891
        %v1910 = vunpack.c.h.b16 %v1891
        %v1911 = vunpack.c.l.b16 %v1892
        %v1912 = vunpack.c.h.b16 %v1892
        %v1913 = vpack.c.b16 %v1907, %v1905
        %v1914 = vpack.c.b16 %v1908, %v1906
        %v1915 = vpack.c.b16 %v1911, %v1909
        %v1916 = vpack.c.b16 %v1912, %v1910
        %1921 = vxpose.xlu0.c.b16.start [1/8] %v1913, 128
        %1922 = vxpose.xlu0.c.b16.cont [2/8] %v1915, 128
        %1923 = vxpose.xlu0.c.b16.cont [3/8] 0, 128
        %1924 = vxpose.xlu0.c.b16.cont [4/8] 0, 128
        %1925 = vxpose.xlu0.c.b16.cont [5/8] 0, 128
        %1926 = vxpose.xlu0.c.b16.cont [6/8] 0, 128
        %1927 = vxpose.xlu0.c.b16.cont [7/8] 0, 128
        %1928 = vxpose.xlu0.c.b16.end [8/8] 0, 128
        %v1929 = vpop.trf.xlu0
        %v1930 = vpop.trf.xlu0
        %v1931 = vpop.trf.xlu0
        %v1932 = vpop.trf.xlu0
        %v1933 = vpop.trf.xlu0
        %v1934 = vpop.trf.xlu0
        %v1935 = vpop.trf.xlu0
        %v1936 = vpop.trf.xlu0
        %1937 = vxpose.xlu0.c.b16.start [1/8] %v1914, 128
        %1938 = vxpose.xlu0.c.b16.cont [2/8] %v1916, 128
        %1939 = vxpose.xlu0.c.b16.cont [3/8] 0, 128
        %1940 = vxpose.xlu0.c.b16.cont [4/8] 0, 128
        %1941 = vxpose.xlu0.c.b16.cont [5/8] 0, 128
        %1942 = vxpose.xlu0.c.b16.cont [6/8] 0, 128
        %1943 = vxpose.xlu0.c.b16.cont [7/8] 0, 128
        %1944 = vxpose.xlu0.c.b16.end [8/8] 0, 128
        %v1945 = vpop.trf.xlu0
        %v1946 = vpop.trf.xlu0
        %v1947 = vpop.trf.xlu0
        %v1948 = vpop.trf.xlu0
        %v1949 = vpop.trf.xlu0
        %v1950 = vpop.trf.xlu0
        %v1951 = vpop.trf.xlu0
        %v1952 = vpop.trf.xlu0
        %v1957 = vunpack.c.l.b16 %v1893
        %v1958 = vunpack.c.h.b16 %v1893
        %v1959 = vunpack.c.l.b16 %v1894
        %v1960 = vunpack.c.h.b16 %v1894
        %v1961 = vunpack.c.l.b16 %v1895
        %v1962 = vunpack.c.h.b16 %v1895
        %v1963 = vunpack.c.l.b16 %v1896
        %v1964 = vunpack.c.h.b16 %v1896
        %v1965 = vpack.c.b16 %v1959, %v1957
        %v1966 = vpack.c.b16 %v1960, %v1958
        %v1967 = vpack.c.b16 %v1963, %v1961
        %v1968 = vpack.c.b16 %v1964, %v1962
        %v1974 = vsel %vm577, %v1929, 0
        %v1977 = vsel %vm577, %v1930, 0
        %v1980 = vsel %vm577, %v1931, 0
        %v1983 = vsel %vm577, %v1932, 0
        %v1986 = vsel %vm577, %v1933, 0
        %v1989 = vsel %vm577, %v1934, 0
        %v1992 = vsel %vm577, %v1935, 0
        %v1995 = vsel %vm577, %v1936, 0
        %v1998 = vsel %vm577, %v1945, 0
        %v2001 = vsel %vm577, %v1946, 0
        %v2004 = vsel %vm577, %v1947, 0
        %v2007 = vsel %vm577, %v1948, 0
        %v2010 = vsel %vm577, %v1949, 0
        %v2013 = vsel %vm577, %v1950, 0
        %v2016 = vsel %vm577, %v1951, 0
        %v2019 = vsel %vm577, %v1952, 0
        %2021 = vmatprep.subr.bf16.mxu0 0
        %2022 = vmatpush1.bf16.msra.mxu0 0
        %2023 = vmatprep.subr.bf16.mxu0 0
        %2024 = vmatpush1.bf16.msra.mxu0 0
        %2025 = vmatprep.subr.bf16.mxu0 0
        %2026 = vmatpush1.bf16.msra.mxu0 0
        %2027 = vmatprep.subr.bf16.mxu0 0
        %2028 = vmatpush1.bf16.msra.mxu0 0
        %2029 = vmatprep.subr.bf16.mxu0 0
        %2030 = vmatpush1.bf16.msra.mxu0 0
        %2031 = vmatprep.subr.bf16.mxu0 0
        %2032 = vmatpush1.bf16.msra.mxu0 0
        %2033 = vmatprep.subr.bf16.mxu0 %v1968
        %2034 = vmatpush1.bf16.msra.mxu0 %v1967
        %2035 = vmatprep.subr.bf16.mxu0 %v1966
        %2036 = vmatpush1.bf16.msra.mxu0 %v1965
        %2037 = vmatprep.subr.bf16.mxu0 0
        %2038 = vmatpush2.bf16.msra.mxu0 0
        %2039 = vmatprep.subr.bf16.mxu0 0
        %2040 = vmatpush2.bf16.msra.mxu0 0
        %2041 = vmatprep.subr.bf16.mxu0 0
        %2042 = vmatpush2.bf16.msra.mxu0 0
        %2043 = vmatprep.subr.bf16.mxu0 0
        %2044 = vmatpush2.bf16.msra.mxu0 0
        %2045 = vmatprep.subr.bf16.mxu0 0
        %2046 = vmatpush2.bf16.msra.mxu0 0
        %2047 = vmatprep.subr.bf16.mxu0 0
        %2048 = vmatpush2.bf16.msra.mxu0 0
        %2049 = vmatprep.subr.bf16.mxu0 0
        %2050 = vmatpush2.bf16.msra.mxu0 0
        %2051 = vmatprep.subr.bf16.mxu0 0
        %2052 = vmatpush2.bf16.msra.mxu0 0
        %2053 = vmatprep.mubr.bf16.mxu0 0
        %2054 = vmatmul.mubr.bf16.gmra.mxu0 %v1974
        %v2055 = vpop.f32.mrf.mxu0
        %v2056 = vadd.f32 0.0, %v2055
        %v2057 = vpop.f32.mrf.mxu0
        %v2058 = vadd.f32 0.0, %v2057
        %v2059 = vpop.f32.mrf.mxu0
        %v2060 = vadd.f32 0.0, %v2059
        %v2061 = vpop.f32.mrf.mxu0
        %v2062 = vadd.f32 0.0, %v2061
        %2063 = vmatprep.mubr.bf16.mxu0 0
        %2064 = vmatmul.mubr.bf16.gmra.mxu0 %v1977
        %v2065 = vpop.f32.mrf.mxu0
        %v2066 = vadd.f32 0.0, %v2065
        %v2067 = vpop.f32.mrf.mxu0
        %v2068 = vadd.f32 0.0, %v2067
        %v2069 = vpop.f32.mrf.mxu0
        %v2070 = vadd.f32 0.0, %v2069
        %v2071 = vpop.f32.mrf.mxu0
        %v2072 = vadd.f32 0.0, %v2071
        %2073 = vmatprep.mubr.bf16.mxu0 0
        %2074 = vmatmul.mubr.bf16.gmra.mxu0 %v1980
        %v2075 = vpop.f32.mrf.mxu0
        %v2076 = vadd.f32 0.0, %v2075
        %v2077 = vpop.f32.mrf.mxu0
        %v2078 = vadd.f32 0.0, %v2077
        %v2079 = vpop.f32.mrf.mxu0
        %v2080 = vadd.f32 0.0, %v2079
        %v2081 = vpop.f32.mrf.mxu0
        %v2082 = vadd.f32 0.0, %v2081
        %2083 = vmatprep.mubr.bf16.mxu0 0
        %2084 = vmatmul.mubr.bf16.gmra.mxu0 %v1983
        %v2085 = vpop.f32.mrf.mxu0
        %v2086 = vadd.f32 0.0, %v2085
        %v2087 = vpop.f32.mrf.mxu0
        %v2088 = vadd.f32 0.0, %v2087
        %v2089 = vpop.f32.mrf.mxu0
        %v2090 = vadd.f32 0.0, %v2089
        %v2091 = vpop.f32.mrf.mxu0
        %v2092 = vadd.f32 0.0, %v2091
        %2093 = vmatprep.mubr.bf16.mxu0 0
        %2094 = vmatmul.mubr.bf16.gmra.mxu0 %v1986
        %v2095 = vpop.f32.mrf.mxu0
        %v2096 = vadd.f32 0.0, %v2095
        %v2097 = vpop.f32.mrf.mxu0
        %v2098 = vadd.f32 0.0, %v2097
        %v2099 = vpop.f32.mrf.mxu0
        %v2100 = vadd.f32 0.0, %v2099
        %v2101 = vpop.f32.mrf.mxu0
        %v2102 = vadd.f32 0.0, %v2101
        %2103 = vmatprep.mubr.bf16.mxu0 0
        %2104 = vmatmul.mubr.bf16.gmra.mxu0 %v1989
        %v2105 = vpop.f32.mrf.mxu0
        %v2106 = vadd.f32 0.0, %v2105
        %v2107 = vpop.f32.mrf.mxu0
        %v2108 = vadd.f32 0.0, %v2107
        %v2109 = vpop.f32.mrf.mxu0
        %v2110 = vadd.f32 0.0, %v2109
        %v2111 = vpop.f32.mrf.mxu0
        %v2112 = vadd.f32 0.0, %v2111
        %2113 = vmatprep.mubr.bf16.mxu0 0
        %2114 = vmatmul.mubr.bf16.gmra.mxu0 %v1992
        %v2115 = vpop.f32.mrf.mxu0
        %v2116 = vadd.f32 0.0, %v2115
        %v2117 = vpop.f32.mrf.mxu0
        %v2118 = vadd.f32 0.0, %v2117
        %v2119 = vpop.f32.mrf.mxu0
        %v2120 = vadd.f32 0.0, %v2119
        %v2121 = vpop.f32.mrf.mxu0
        %v2122 = vadd.f32 0.0, %v2121
        %2123 = vmatprep.mubr.bf16.mxu0 0
        %2124 = vmatmul.mubr.bf16.gmra.mxu0 %v1995
        %v2125 = vpop.f32.mrf.mxu0
        %v2126 = vadd.f32 0.0, %v2125
        %v2127 = vpop.f32.mrf.mxu0
        %v2128 = vadd.f32 0.0, %v2127
        %v2129 = vpop.f32.mrf.mxu0
        %v2130 = vadd.f32 0.0, %v2129
        %v2131 = vpop.f32.mrf.mxu0
        %v2132 = vadd.f32 0.0, %v2131
        %2133 = vmatprep.mubr.bf16.mxu0 0
        %2134 = vmatmul.mubr.bf16.gmra.mxu0 %v1998
        %v2135 = vpop.f32.mrf.mxu0
        %v2136 = vadd.f32 0.0, %v2135
        %v2137 = vpop.f32.mrf.mxu0
        %v2138 = vadd.f32 0.0, %v2137
        %v2139 = vpop.f32.mrf.mxu0
        %v2140 = vadd.f32 0.0, %v2139
        %v2141 = vpop.f32.mrf.mxu0
        %v2142 = vadd.f32 0.0, %v2141
        %2143 = vmatprep.mubr.bf16.mxu0 0
        %2144 = vmatmul.mubr.bf16.gmra.mxu0 %v2001
        %v2145 = vpop.f32.mrf.mxu0
        %v2146 = vadd.f32 0.0, %v2145
        %v2147 = vpop.f32.mrf.mxu0
        %v2148 = vadd.f32 0.0, %v2147
        %v2149 = vpop.f32.mrf.mxu0
        %v2150 = vadd.f32 0.0, %v2149
        %v2151 = vpop.f32.mrf.mxu0
        %v2152 = vadd.f32 0.0, %v2151
        %2153 = vmatprep.mubr.bf16.mxu0 0
        %2154 = vmatmul.mubr.bf16.gmra.mxu0 %v2004
        %v2155 = vpop.f32.mrf.mxu0
        %v2156 = vadd.f32 0.0, %v2155
        %v2157 = vpop.f32.mrf.mxu0
        %v2158 = vadd.f32 0.0, %v2157
        %v2159 = vpop.f32.mrf.mxu0
        %v2160 = vadd.f32 0.0, %v2159
        %v2161 = vpop.f32.mrf.mxu0
        %v2162 = vadd.f32 0.0, %v2161
        %2163 = vmatprep.mubr.bf16.mxu0 0
        %2164 = vmatmul.mubr.bf16.gmra.mxu0 %v2007
        %v2165 = vpop.f32.mrf.mxu0
        %v2166 = vadd.f32 0.0, %v2165
        %v2167 = vpop.f32.mrf.mxu0
        %v2168 = vadd.f32 0.0, %v2167
        %v2169 = vpop.f32.mrf.mxu0
        %v2170 = vadd.f32 0.0, %v2169
        %v2171 = vpop.f32.mrf.mxu0
        %v2172 = vadd.f32 0.0, %v2171
        %2173 = vmatprep.mubr.bf16.mxu0 0
        %2174 = vmatmul.mubr.bf16.gmra.mxu0 %v2010
        %v2175 = vpop.f32.mrf.mxu0
        %v2176 = vadd.f32 0.0, %v2175
        %v2177 = vpop.f32.mrf.mxu0
        %v2178 = vadd.f32 0.0, %v2177
        %v2179 = vpop.f32.mrf.mxu0
        %v2180 = vadd.f32 0.0, %v2179
        %v2181 = vpop.f32.mrf.mxu0
        %v2182 = vadd.f32 0.0, %v2181
        %2183 = vmatprep.mubr.bf16.mxu0 0
        %2184 = vmatmul.mubr.bf16.gmra.mxu0 %v2013
        %v2185 = vpop.f32.mrf.mxu0
        %v2186 = vadd.f32 0.0, %v2185
        %v2187 = vpop.f32.mrf.mxu0
        %v2188 = vadd.f32 0.0, %v2187
        %v2189 = vpop.f32.mrf.mxu0
        %v2190 = vadd.f32 0.0, %v2189
        %v2191 = vpop.f32.mrf.mxu0
        %v2192 = vadd.f32 0.0, %v2191
        %2193 = vmatprep.mubr.bf16.mxu0 0
        %2194 = vmatmul.mubr.bf16.gmra.mxu0 %v2016
        %v2195 = vpop.f32.mrf.mxu0
        %v2196 = vadd.f32 0.0, %v2195
        %v2197 = vpop.f32.mrf.mxu0
        %v2198 = vadd.f32 0.0, %v2197
        %v2199 = vpop.f32.mrf.mxu0
        %v2200 = vadd.f32 0.0, %v2199
        %v2201 = vpop.f32.mrf.mxu0
        %v2202 = vadd.f32 0.0, %v2201
        %2203 = vmatprep.mubr.bf16.mxu0 0
        %2204 = vmatmul.mubr.bf16.gmra.mxu0 %v2019
        %v2205 = vpop.f32.mrf.mxu0
        %v2206 = vadd.f32 0.0, %v2205
        %v2207 = vpop.f32.mrf.mxu0
        %v2208 = vadd.f32 0.0, %v2207
        %v2209 = vpop.f32.mrf.mxu0
        %v2210 = vadd.f32 0.0, %v2209
        %v2211 = vpop.f32.mrf.mxu0
        %v2212 = vadd.f32 0.0, %v2211
        %2213 = vdwg.mxu0
        %v2214 = vmax.f32 %v2056, %v2058
        %2215 = vmax.xlane.f32.xlu0 %v2214
        %v2216 = vpop.xlane.xlu0 %2215
        %v2217 = vmax.f32 %v2060, %v2062
        %2218 = vmax.xlane.f32.xlu0 %v2217
        %v2219 = vpop.xlane.xlu0 %2218
        %v2220 = vmax.f32 %v2066, %v2068
        %2221 = vmax.xlane.f32.xlu0 %v2220
        %v2222 = vpop.xlane.xlu0 %2221
        %v2223 = vmax.f32 %v2070, %v2072
        %2224 = vmax.xlane.f32.xlu0 %v2223
        %v2225 = vpop.xlane.xlu0 %2224
        %v2226 = vmax.f32 %v2076, %v2078
        %2227 = vmax.xlane.f32.xlu0 %v2226
        %v2228 = vpop.xlane.xlu0 %2227
        %v2229 = vmax.f32 %v2080, %v2082
        %2230 = vmax.xlane.f32.xlu0 %v2229
        %v2231 = vpop.xlane.xlu0 %2230
        %v2232 = vmax.f32 %v2086, %v2088
        %2233 = vmax.xlane.f32.xlu0 %v2232
        %v2234 = vpop.xlane.xlu0 %2233
        %v2235 = vmax.f32 %v2090, %v2092
        %2236 = vmax.xlane.f32.xlu0 %v2235
        %v2237 = vpop.xlane.xlu0 %2236
        %v2238 = vmax.f32 %v2096, %v2098
        %2239 = vmax.xlane.f32.xlu0 %v2238
        %v2240 = vpop.xlane.xlu0 %2239
        %v2241 = vmax.f32 %v2100, %v2102
        %2242 = vmax.xlane.f32.xlu0 %v2241
        %v2243 = vpop.xlane.xlu0 %2242
        %v2244 = vmax.f32 %v2106, %v2108
        %2245 = vmax.xlane.f32.xlu0 %v2244
        %v2246 = vpop.xlane.xlu0 %2245
        %v2247 = vmax.f32 %v2110, %v2112
        %2248 = vmax.xlane.f32.xlu0 %v2247
        %v2249 = vpop.xlane.xlu0 %2248
        %v2250 = vmax.f32 %v2116, %v2118
        %2251 = vmax.xlane.f32.xlu0 %v2250
        %v2252 = vpop.xlane.xlu0 %2251
        %v2253 = vmax.f32 %v2120, %v2122
        %2254 = vmax.xlane.f32.xlu0 %v2253
        %v2255 = vpop.xlane.xlu0 %2254
        %v2256 = vmax.f32 %v2126, %v2128
        %2257 = vmax.xlane.f32.xlu0 %v2256
        %v2258 = vpop.xlane.xlu0 %2257
        %v2259 = vmax.f32 %v2130, %v2132
        %2260 = vmax.xlane.f32.xlu0 %v2259
        %v2261 = vpop.xlane.xlu0 %2260
        %v2262 = vmax.f32 %v2136, %v2138
        %2263 = vmax.xlane.f32.xlu0 %v2262
        %v2264 = vpop.xlane.xlu0 %2263
        %v2265 = vmax.f32 %v2140, %v2142
        %2266 = vmax.xlane.f32.xlu0 %v2265
        %v2267 = vpop.xlane.xlu0 %2266
        %v2268 = vmax.f32 %v2146, %v2148
        %2269 = vmax.xlane.f32.xlu0 %v2268
        %v2270 = vpop.xlane.xlu0 %2269
        %v2271 = vmax.f32 %v2150, %v2152
        %2272 = vmax.xlane.f32.xlu0 %v2271
        %v2273 = vpop.xlane.xlu0 %2272
        %v2274 = vmax.f32 %v2156, %v2158
        %2275 = vmax.xlane.f32.xlu0 %v2274
        %v2276 = vpop.xlane.xlu0 %2275
        %v2277 = vmax.f32 %v2160, %v2162
        %2278 = vmax.xlane.f32.xlu0 %v2277
        %v2279 = vpop.xlane.xlu0 %2278
        %v2280 = vmax.f32 %v2166, %v2168
        %2281 = vmax.xlane.f32.xlu0 %v2280
        %v2282 = vpop.xlane.xlu0 %2281
        %v2283 = vmax.f32 %v2170, %v2172
        %2284 = vmax.xlane.f32.xlu0 %v2283
        %v2285 = vpop.xlane.xlu0 %2284
        %v2286 = vmax.f32 %v2176, %v2178
        %2287 = vmax.xlane.f32.xlu0 %v2286
        %v2288 = vpop.xlane.xlu0 %2287
        %v2289 = vmax.f32 %v2180, %v2182
        %2290 = vmax.xlane.f32.xlu0 %v2289
        %v2291 = vpop.xlane.xlu0 %2290
        %v2292 = vmax.f32 %v2186, %v2188
        %2293 = vmax.xlane.f32.xlu0 %v2292
        %v2294 = vpop.xlane.xlu0 %2293
        %v2295 = vmax.f32 %v2190, %v2192
        %2296 = vmax.xlane.f32.xlu0 %v2295
        %v2297 = vpop.xlane.xlu0 %2296
        %v2298 = vmax.f32 %v2196, %v2198
        %2299 = vmax.xlane.f32.xlu0 %v2298
        %v2300 = vpop.xlane.xlu0 %2299
        %v2301 = vmax.f32 %v2200, %v2202
        %2302 = vmax.xlane.f32.xlu0 %v2301
        %v2303 = vpop.xlane.xlu0 %2302
        %v2304 = vmax.f32 %v2206, %v2208
        %2305 = vmax.xlane.f32.xlu0 %v2304
        %v2306 = vpop.xlane.xlu0 %2305
        %v2307 = vmax.f32 %v2210, %v2212
        %2308 = vmax.xlane.f32.xlu0 %v2307
        %v2309 = vpop.xlane.xlu0 %2308
        %v2310 = vsub.f32 %v2056, %v2216
        %v2311 = vsub.f32 %v2058, %v2216
        %v2312 = vsub.f32 %v2060, %v2219
        %v2313 = vsub.f32 %v2062, %v2219
        %v2314 = vsub.f32 %v2066, %v2222
        %v2315 = vsub.f32 %v2068, %v2222
        %v2316 = vsub.f32 %v2070, %v2225
        %v2317 = vsub.f32 %v2072, %v2225
        %v2318 = vsub.f32 %v2076, %v2228
        %v2319 = vsub.f32 %v2078, %v2228
        %v2320 = vsub.f32 %v2080, %v2231
        %v2321 = vsub.f32 %v2082, %v2231
        %v2322 = vsub.f32 %v2086, %v2234
        %v2323 = vsub.f32 %v2088, %v2234
        %v2324 = vsub.f32 %v2090, %v2237
        %v2325 = vsub.f32 %v2092, %v2237
        %v2326 = vsub.f32 %v2096, %v2240
        %v2327 = vsub.f32 %v2098, %v2240
        %v2328 = vsub.f32 %v2100, %v2243
        %v2329 = vsub.f32 %v2102, %v2243
        %v2330 = vsub.f32 %v2106, %v2246
        %v2331 = vsub.f32 %v2108, %v2246
        %v2332 = vsub.f32 %v2110, %v2249
        %v2333 = vsub.f32 %v2112, %v2249
        %v2334 = vsub.f32 %v2116, %v2252
        %v2335 = vsub.f32 %v2118, %v2252
        %v2336 = vsub.f32 %v2120, %v2255
        %v2337 = vsub.f32 %v2122, %v2255
        %v2338 = vsub.f32 %v2126, %v2258
        %v2339 = vsub.f32 %v2128, %v2258
        %v2340 = vsub.f32 %v2130, %v2261
        %v2341 = vsub.f32 %v2132, %v2261
        %v2342 = vsub.f32 %v2136, %v2264
        %v2343 = vsub.f32 %v2138, %v2264
        %v2344 = vsub.f32 %v2140, %v2267
        %v2345 = vsub.f32 %v2142, %v2267
        %v2346 = vsub.f32 %v2146, %v2270
        %v2347 = vsub.f32 %v2148, %v2270
        %v2348 = vsub.f32 %v2150, %v2273
        %v2349 = vsub.f32 %v2152, %v2273
        %v2350 = vsub.f32 %v2156, %v2276
        %v2351 = vsub.f32 %v2158, %v2276
        %v2352 = vsub.f32 %v2160, %v2279
        %v2353 = vsub.f32 %v2162, %v2279
        %v2354 = vsub.f32 %v2166, %v2282
        %v2355 = vsub.f32 %v2168, %v2282
        %v2356 = vsub.f32 %v2170, %v2285
        %v2357 = vsub.f32 %v2172, %v2285
        %v2358 = vsub.f32 %v2176, %v2288
        %v2359 = vsub.f32 %v2178, %v2288
        %v2360 = vsub.f32 %v2180, %v2291
        %v2361 = vsub.f32 %v2182, %v2291
        %v2362 = vsub.f32 %v2186, %v2294
        %v2363 = vsub.f32 %v2188, %v2294
        %v2364 = vsub.f32 %v2190, %v2297
        %v2365 = vsub.f32 %v2192, %v2297
        %v2366 = vsub.f32 %v2196, %v2300
        %v2367 = vsub.f32 %v2198, %v2300
        %v2368 = vsub.f32 %v2200, %v2303
        %v2369 = vsub.f32 %v2202, %v2303
        %v2370 = vsub.f32 %v2206, %v2306
        %v2371 = vsub.f32 %v2208, %v2306
        %v2372 = vsub.f32 %v2210, %v2309
        %v2373 = vsub.f32 %v2212, %v2309
        %v2374 = vmul.f32 %v2310, 1.442695
        %v2375 = vpow.pop %v2374
        %v2376 = vmul.f32 %v2311, 1.442695
        %v2377 = vpow.pop %v2376
        %v2378 = vmul.f32 %v2312, 1.442695
        %v2379 = vpow.pop %v2378
        %v2380 = vmul.f32 %v2313, 1.442695
        %v2381 = vpow.pop %v2380
        %v2382 = vmul.f32 %v2314, 1.442695
        %v2383 = vpow.pop %v2382
        %v2384 = vmul.f32 %v2315, 1.442695
        %v2385 = vpow.pop %v2384
        %v2386 = vmul.f32 %v2316, 1.442695
        %v2387 = vpow.pop %v2386
        %v2388 = vmul.f32 %v2317, 1.442695
        %v2389 = vpow.pop %v2388
        %v2390 = vmul.f32 %v2318, 1.442695
        %v2391 = vpow.pop %v2390
        %v2392 = vmul.f32 %v2319, 1.442695
        %v2393 = vpow.pop %v2392
        %v2394 = vmul.f32 %v2320, 1.442695
        %v2395 = vpow.pop %v2394
        %v2396 = vmul.f32 %v2321, 1.442695
        %v2397 = vpow.pop %v2396
        %v2398 = vmul.f32 %v2322, 1.442695
        %v2399 = vpow.pop %v2398
        %v2400 = vmul.f32 %v2323, 1.442695
        %v2401 = vpow.pop %v2400
        %v2402 = vmul.f32 %v2324, 1.442695
        %v2403 = vpow.pop %v2402
        %v2404 = vmul.f32 %v2325, 1.442695
        %v2405 = vpow.pop %v2404
        %v2406 = vmul.f32 %v2326, 1.442695
        %v2407 = vpow.pop %v2406
        %v2408 = vmul.f32 %v2327, 1.442695
        %v2409 = vpow.pop %v2408
        %v2410 = vmul.f32 %v2328, 1.442695
        %v2411 = vpow.pop %v2410
        %v2412 = vmul.f32 %v2329, 1.442695
        %v2413 = vpow.pop %v2412
        %v2414 = vmul.f32 %v2330, 1.442695
        %v2415 = vpow.pop %v2414
        %v2416 = vmul.f32 %v2331, 1.442695
        %v2417 = vpow.pop %v2416
        %v2418 = vmul.f32 %v2332, 1.442695
        %v2419 = vpow.pop %v2418
        %v2420 = vmul.f32 %v2333, 1.442695
        %v2421 = vpow.pop %v2420
        %v2422 = vmul.f32 %v2334, 1.442695
        %v2423 = vpow.pop %v2422
        %v2424 = vmul.f32 %v2335, 1.442695
        %v2425 = vpow.pop %v2424
        %v2426 = vmul.f32 %v2336, 1.442695
        %v2427 = vpow.pop %v2426
        %v2428 = vmul.f32 %v2337, 1.442695
        %v2429 = vpow.pop %v2428
        %v2430 = vmul.f32 %v2338, 1.442695
        %v2431 = vpow.pop %v2430
        %v2432 = vmul.f32 %v2339, 1.442695
        %v2433 = vpow.pop %v2432
        %v2434 = vmul.f32 %v2340, 1.442695
        %v2435 = vpow.pop %v2434
        %v2436 = vmul.f32 %v2341, 1.442695
        %v2437 = vpow.pop %v2436
        %v2438 = vmul.f32 %v2342, 1.442695
        %v2439 = vpow.pop %v2438
        %v2440 = vmul.f32 %v2343, 1.442695
        %v2441 = vpow.pop %v2440
        %v2442 = vmul.f32 %v2344, 1.442695
        %v2443 = vpow.pop %v2442
        %v2444 = vmul.f32 %v2345, 1.442695
        %v2445 = vpow.pop %v2444
        %v2446 = vmul.f32 %v2346, 1.442695
        %v2447 = vpow.pop %v2446
        %v2448 = vmul.f32 %v2347, 1.442695
        %v2449 = vpow.pop %v2448
        %v2450 = vmul.f32 %v2348, 1.442695
        %v2451 = vpow.pop %v2450
        %v2452 = vmul.f32 %v2349, 1.442695
        %v2453 = vpow.pop %v2452
        %v2454 = vmul.f32 %v2350, 1.442695
        %v2455 = vpow.pop %v2454
        %v2456 = vmul.f32 %v2351, 1.442695
        %v2457 = vpow.pop %v2456
        %v2458 = vmul.f32 %v2352, 1.442695
        %v2459 = vpow.pop %v2458
        %v2460 = vmul.f32 %v2353, 1.442695
        %v2461 = vpow.pop %v2460
        %v2462 = vmul.f32 %v2354, 1.442695
        %v2463 = vpow.pop %v2462
        %v2464 = vmul.f32 %v2355, 1.442695
        %v2465 = vpow.pop %v2464
        %v2466 = vmul.f32 %v2356, 1.442695
        %v2467 = vpow.pop %v2466
        %v2468 = vmul.f32 %v2357, 1.442695
        %v2469 = vpow.pop %v2468
        %v2470 = vmul.f32 %v2358, 1.442695
        %v2471 = vpow.pop %v2470
        %v2472 = vmul.f32 %v2359, 1.442695
        %v2473 = vpow.pop %v2472
        %v2474 = vmul.f32 %v2360, 1.442695
        %v2475 = vpow.pop %v2474
        %v2476 = vmul.f32 %v2361, 1.442695
        %v2477 = vpow.pop %v2476
        %v2478 = vmul.f32 %v2362, 1.442695
        %v2479 = vpow.pop %v2478
        %v2480 = vmul.f32 %v2363, 1.442695
        %v2481 = vpow.pop %v2480
        %v2482 = vmul.f32 %v2364, 1.442695
        %v2483 = vpow.pop %v2482
        %v2484 = vmul.f32 %v2365, 1.442695
        %v2485 = vpow.pop %v2484
        %v2486 = vmul.f32 %v2366, 1.442695
        %v2487 = vpow.pop %v2486
        %v2488 = vmul.f32 %v2367, 1.442695
        %v2489 = vpow.pop %v2488
        %v2490 = vmul.f32 %v2368, 1.442695
        %v2491 = vpow.pop %v2490
        %v2492 = vmul.f32 %v2369, 1.442695
        %v2493 = vpow.pop %v2492
        %v2494 = vmul.f32 %v2370, 1.442695
        %v2495 = vpow.pop %v2494
        %v2496 = vmul.f32 %v2371, 1.442695
        %v2497 = vpow.pop %v2496
        %v2498 = vmul.f32 %v2372, 1.442695
        %v2499 = vpow.pop %v2498
        %v2500 = vmul.f32 %v2373, 1.442695
        %v2501 = vpow.pop %v2500
        %v2502 = vadd.f32 %v2375, %v2377
        %2503 = vadd.xlane.f32.xlu0 %v2502
        %v2504 = vpop.xlane.xlu0 %2503
        %v2505 = vadd.f32 %v2379, %v2381
        %2506 = vadd.xlane.f32.xlu0 %v2505
        %v2507 = vpop.xlane.xlu0 %2506
        %v2508 = vadd.f32 %v2383, %v2385
        %2509 = vadd.xlane.f32.xlu0 %v2508
        %v2510 = vpop.xlane.xlu0 %2509
        %v2511 = vadd.f32 %v2387, %v2389
        %2512 = vadd.xlane.f32.xlu0 %v2511
        %v2513 = vpop.xlane.xlu0 %2512
        %v2514 = vadd.f32 %v2391, %v2393
        %2515 = vadd.xlane.f32.xlu0 %v2514
        %v2516 = vpop.xlane.xlu0 %2515
        %v2517 = vadd.f32 %v2395, %v2397
        %2518 = vadd.xlane.f32.xlu0 %v2517
        %v2519 = vpop.xlane.xlu0 %2518
        %v2520 = vadd.f32 %v2399, %v2401
        %2521 = vadd.xlane.f32.xlu0 %v2520
        %v2522 = vpop.xlane.xlu0 %2521
        %v2523 = vadd.f32 %v2403, %v2405
        %2524 = vadd.xlane.f32.xlu0 %v2523
        %v2525 = vpop.xlane.xlu0 %2524
        %v2526 = vadd.f32 %v2407, %v2409
        %2527 = vadd.xlane.f32.xlu0 %v2526
        %v2528 = vpop.xlane.xlu0 %2527
        %v2529 = vadd.f32 %v2411, %v2413
        %2530 = vadd.xlane.f32.xlu0 %v2529
        %v2531 = vpop.xlane.xlu0 %2530
        %v2532 = vadd.f32 %v2415, %v2417
        %2533 = vadd.xlane.f32.xlu0 %v2532
        %v2534 = vpop.xlane.xlu0 %2533
        %v2535 = vadd.f32 %v2419, %v2421
        %2536 = vadd.xlane.f32.xlu0 %v2535
        %v2537 = vpop.xlane.xlu0 %2536
        %v2538 = vadd.f32 %v2423, %v2425
        %2539 = vadd.xlane.f32.xlu0 %v2538
        %v2540 = vpop.xlane.xlu0 %2539
        %v2541 = vadd.f32 %v2427, %v2429
        %2542 = vadd.xlane.f32.xlu0 %v2541
        %v2543 = vpop.xlane.xlu0 %2542
        %v2544 = vadd.f32 %v2431, %v2433
        %2545 = vadd.xlane.f32.xlu0 %v2544
        %v2546 = vpop.xlane.xlu0 %2545
        %v2547 = vadd.f32 %v2435, %v2437
        %2548 = vadd.xlane.f32.xlu0 %v2547
        %v2549 = vpop.xlane.xlu0 %2548
        %v2550 = vadd.f32 %v2439, %v2441
        %2551 = vadd.xlane.f32.xlu0 %v2550
        %v2552 = vpop.xlane.xlu0 %2551
        %v2553 = vadd.f32 %v2443, %v2445
        %2554 = vadd.xlane.f32.xlu0 %v2553
        %v2555 = vpop.xlane.xlu0 %2554
        %v2556 = vadd.f32 %v2447, %v2449
        %2557 = vadd.xlane.f32.xlu0 %v2556
        %v2558 = vpop.xlane.xlu0 %2557
        %v2559 = vadd.f32 %v2451, %v2453
        %2560 = vadd.xlane.f32.xlu0 %v2559
        %v2561 = vpop.xlane.xlu0 %2560
        %v2562 = vadd.f32 %v2455, %v2457
        %2563 = vadd.xlane.f32.xlu0 %v2562
        %v2564 = vpop.xlane.xlu0 %2563
        %v2565 = vadd.f32 %v2459, %v2461
        %2566 = vadd.xlane.f32.xlu0 %v2565
        %v2567 = vpop.xlane.xlu0 %2566
        %v2568 = vadd.f32 %v2463, %v2465
        %2569 = vadd.xlane.f32.xlu0 %v2568
        %v2570 = vpop.xlane.xlu0 %2569
        %v2571 = vadd.f32 %v2467, %v2469
        %2572 = vadd.xlane.f32.xlu0 %v2571
        %v2573 = vpop.xlane.xlu0 %2572
        %v2574 = vadd.f32 %v2471, %v2473
        %2575 = vadd.xlane.f32.xlu0 %v2574
        %v2576 = vpop.xlane.xlu0 %2575
        %v2577 = vadd.f32 %v2475, %v2477
        %2578 = vadd.xlane.f32.xlu0 %v2577
        %v2579 = vpop.xlane.xlu0 %2578
        %v2580 = vadd.f32 %v2479, %v2481
        %2581 = vadd.xlane.f32.xlu0 %v2580
        %v2582 = vpop.xlane.xlu0 %2581
        %v2583 = vadd.f32 %v2483, %v2485
        %2584 = vadd.xlane.f32.xlu0 %v2583
        %v2585 = vpop.xlane.xlu0 %2584
        %v2586 = vadd.f32 %v2487, %v2489
        %2587 = vadd.xlane.f32.xlu0 %v2586
        %v2588 = vpop.xlane.xlu0 %2587
        %v2589 = vadd.f32 %v2491, %v2493
        %2590 = vadd.xlane.f32.xlu0 %v2589
        %v2591 = vpop.xlane.xlu0 %2590
        %v2592 = vadd.f32 %v2495, %v2497
        %2593 = vadd.xlane.f32.xlu0 %v2592
        %v2594 = vpop.xlane.xlu0 %2593
        %v2595 = vadd.f32 %v2499, %v2501
        %2596 = vadd.xlane.f32.xlu0 %v2595
        %v2597 = vpop.xlane.xlu0 %2596
        %v2598 = vrcp.pop %v2504
        %v2599 = vrcp.pop %v2507
        %v2600 = vrcp.pop %v2510
        %v2601 = vrcp.pop %v2513
        %v2602 = vrcp.pop %v2516
        %v2603 = vrcp.pop %v2519
        %v2604 = vrcp.pop %v2522
        %v2605 = vrcp.pop %v2525
        %v2606 = vrcp.pop %v2528
        %v2607 = vrcp.pop %v2531
        %v2608 = vrcp.pop %v2534
        %v2609 = vrcp.pop %v2537
        %v2610 = vrcp.pop %v2540
        %v2611 = vrcp.pop %v2543
        %v2612 = vrcp.pop %v2546
        %v2613 = vrcp.pop %v2549
        %v2614 = vrcp.pop %v2552
        %v2615 = vrcp.pop %v2555
        %v2616 = vrcp.pop %v2558
        %v2617 = vrcp.pop %v2561
        %v2618 = vrcp.pop %v2564
        %v2619 = vrcp.pop %v2567
        %v2620 = vrcp.pop %v2570
        %v2621 = vrcp.pop %v2573
        %v2622 = vrcp.pop %v2576
        %v2623 = vrcp.pop %v2579
        %v2624 = vrcp.pop %v2582
        %v2625 = vrcp.pop %v2585
        %v2626 = vrcp.pop %v2588
        %v2627 = vrcp.pop %v2591
        %v2628 = vrcp.pop %v2594
        %v2629 = vrcp.pop %v2597
        %v2630 = vmul.f32 %v2375, %v2598
        %v2631 = vmul.f32 %v2377, %v2598
        %v2632 = vmul.f32 %v2379, %v2599
        %v2633 = vmul.f32 %v2381, %v2599
        %v2634 = vmul.f32 %v2383, %v2600
        %v2635 = vmul.f32 %v2385, %v2600
        %v2636 = vmul.f32 %v2387, %v2601
        %v2637 = vmul.f32 %v2389, %v2601
        %v2638 = vmul.f32 %v2391, %v2602
        %v2639 = vmul.f32 %v2393, %v2602
        %v2640 = vmul.f32 %v2395, %v2603
        %v2641 = vmul.f32 %v2397, %v2603
        %v2642 = vmul.f32 %v2399, %v2604
        %v2643 = vmul.f32 %v2401, %v2604
        %v2644 = vmul.f32 %v2403, %v2605
        %v2645 = vmul.f32 %v2405, %v2605
        %v2646 = vmul.f32 %v2407, %v2606
        %v2647 = vmul.f32 %v2409, %v2606
        %v2648 = vmul.f32 %v2411, %v2607
        %v2649 = vmul.f32 %v2413, %v2607
        %v2650 = vmul.f32 %v2415, %v2608
        %v2651 = vmul.f32 %v2417, %v2608
        %v2652 = vmul.f32 %v2419, %v2609
        %v2653 = vmul.f32 %v2421, %v2609
        %v2654 = vmul.f32 %v2423, %v2610
        %v2655 = vmul.f32 %v2425, %v2610
        %v2656 = vmul.f32 %v2427, %v2611
        %v2657 = vmul.f32 %v2429, %v2611
        %v2658 = vmul.f32 %v2431, %v2612
        %v2659 = vmul.f32 %v2433, %v2612
        %v2660 = vmul.f32 %v2435, %v2613
        %v2661 = vmul.f32 %v2437, %v2613
        %v2662 = vmul.f32 %v2439, %v2614
        %v2663 = vmul.f32 %v2441, %v2614
        %v2664 = vmul.f32 %v2443, %v2615
        %v2665 = vmul.f32 %v2445, %v2615
        %v2666 = vmul.f32 %v2447, %v2616
        %v2667 = vmul.f32 %v2449, %v2616
        %v2668 = vmul.f32 %v2451, %v2617
        %v2669 = vmul.f32 %v2453, %v2617
        %v2670 = vmul.f32 %v2455, %v2618
        %v2671 = vmul.f32 %v2457, %v2618
        %v2672 = vmul.f32 %v2459, %v2619
        %v2673 = vmul.f32 %v2461, %v2619
        %v2674 = vmul.f32 %v2463, %v2620
        %v2675 = vmul.f32 %v2465, %v2620
        %v2676 = vmul.f32 %v2467, %v2621
        %v2677 = vmul.f32 %v2469, %v2621
        %v2678 = vmul.f32 %v2471, %v2622
        %v2679 = vmul.f32 %v2473, %v2622
        %v2680 = vmul.f32 %v2475, %v2623
        %v2681 = vmul.f32 %v2477, %v2623
        %v2682 = vmul.f32 %v2479, %v2624
        %v2683 = vmul.f32 %v2481, %v2624
        %v2684 = vmul.f32 %v2483, %v2625
        %v2685 = vmul.f32 %v2485, %v2625
        %v2686 = vmul.f32 %v2487, %v2626
        %v2687 = vmul.f32 %v2489, %v2626
        %v2688 = vmul.f32 %v2491, %v2627
        %v2689 = vmul.f32 %v2493, %v2627
        %v2690 = vmul.f32 %v2495, %v2628
        %v2691 = vmul.f32 %v2497, %v2628
        %v2692 = vmul.f32 %v2499, %v2629
        %v2693 = vmul.f32 %v2501, %v2629
        %v2694 = vpack.c.bf16 %v2632, %v2630
        %v2695 = vpack.c.bf16 %v2633, %v2631
        %v2696 = vpack.c.bf16 %v2636, %v2634
        %v2697 = vpack.c.bf16 %v2637, %v2635
        %v2698 = vpack.c.bf16 %v2640, %v2638
        %v2699 = vpack.c.bf16 %v2641, %v2639
        %v2700 = vpack.c.bf16 %v2644, %v2642
        %v2701 = vpack.c.bf16 %v2645, %v2643
        %v2702 = vpack.c.bf16 %v2648, %v2646
        %v2703 = vpack.c.bf16 %v2649, %v2647
        %v2704 = vpack.c.bf16 %v2652, %v2650
        %v2705 = vpack.c.bf16 %v2653, %v2651
        %v2706 = vpack.c.bf16 %v2656, %v2654
        %v2707 = vpack.c.bf16 %v2657, %v2655
        %v2708 = vpack.c.bf16 %v2660, %v2658
        %v2709 = vpack.c.bf16 %v2661, %v2659
        %v2710 = vpack.c.bf16 %v2664, %v2662
        %v2711 = vpack.c.bf16 %v2665, %v2663
        %v2712 = vpack.c.bf16 %v2668, %v2666
        %v2713 = vpack.c.bf16 %v2669, %v2667
        %v2714 = vpack.c.bf16 %v2672, %v2670
        %v2715 = vpack.c.bf16 %v2673, %v2671
        %v2716 = vpack.c.bf16 %v2676, %v2674
        %v2717 = vpack.c.bf16 %v2677, %v2675
        %v2718 = vpack.c.bf16 %v2680, %v2678
        %v2719 = vpack.c.bf16 %v2681, %v2679
        %v2720 = vpack.c.bf16 %v2684, %v2682
        %v2721 = vpack.c.bf16 %v2685, %v2683
        %v2722 = vpack.c.bf16 %v2688, %v2686
        %v2723 = vpack.c.bf16 %v2689, %v2687
        %v2724 = vpack.c.bf16 %v2692, %v2690
        %v2725 = vpack.c.bf16 %v2693, %v2691
        %v2730 = vunpack.c.l.b16 %v1897
        %v2731 = vunpack.c.h.b16 %v1897
        %v2732 = vunpack.c.l.b16 %v1898
        %v2733 = vunpack.c.h.b16 %v1898
        %v2734 = vunpack.c.l.b16 %v1899
        %v2735 = vunpack.c.h.b16 %v1899
        %v2736 = vunpack.c.l.b16 %v1900
        %v2737 = vunpack.c.h.b16 %v1900
        %v2738 = vpack.c.b16 %v2732, %v2730
        %v2739 = vpack.c.b16 %v2733, %v2731
        %v2740 = vpack.c.b16 %v2736, %v2734
        %v2741 = vpack.c.b16 %v2737, %v2735
        %2746 = vmatprep.subr.bf16.mxu0 %v2709
        %2747 = vmatpush1.bf16.xpose.msra.mxu0 %v2708
        %2748 = vmatprep.subr.bf16.mxu0 %v2707
        %2749 = vmatpush1.bf16.xpose.msra.mxu0 %v2706
        %2750 = vmatprep.subr.bf16.mxu0 %v2705
        %2751 = vmatpush1.bf16.xpose.msra.mxu0 %v2704
        %2752 = vmatprep.subr.bf16.mxu0 %v2703
        %2753 = vmatpush1.bf16.xpose.msra.mxu0 %v2702
        %2754 = vmatprep.subr.bf16.mxu0 %v2701
        %2755 = vmatpush1.bf16.xpose.msra.mxu0 %v2700
        %2756 = vmatprep.subr.bf16.mxu0 %v2699
        %2757 = vmatpush1.bf16.xpose.msra.mxu0 %v2698
        %2758 = vmatprep.subr.bf16.mxu0 %v2697
        %2759 = vmatpush1.bf16.xpose.msra.mxu0 %v2696
        %2760 = vmatprep.subr.bf16.mxu0 %v2695
        %2761 = vmatpush1.bf16.xpose.msra.mxu0 %v2694
        %2762 = vmatprep.subr.bf16.mxu0 %v2725
        %2763 = vmatpush2.bf16.xpose.msra.mxu0 %v2724
        %2764 = vmatprep.subr.bf16.mxu0 %v2723
        %2765 = vmatpush2.bf16.xpose.msra.mxu0 %v2722
        %2766 = vmatprep.subr.bf16.mxu0 %v2721
        %2767 = vmatpush2.bf16.xpose.msra.mxu0 %v2720
        %2768 = vmatprep.subr.bf16.mxu0 %v2719
        %2769 = vmatpush2.bf16.xpose.msra.mxu0 %v2718
        %2770 = vmatprep.subr.bf16.mxu0 %v2717
        %2771 = vmatpush2.bf16.xpose.msra.mxu0 %v2716
        %2772 = vmatprep.subr.bf16.mxu0 %v2715
        %2773 = vmatpush2.bf16.xpose.msra.mxu0 %v2714
        %2774 = vmatprep.subr.bf16.mxu0 %v2713
        %2775 = vmatpush2.bf16.xpose.msra.mxu0 %v2712
        %2776 = vmatprep.subr.bf16.mxu0 %v2711
        %2777 = vmatpush2.bf16.xpose.msra.mxu0 %v2710
        %2778 = vmatprep.mubr.bf16.mxu0 %v2739
        %2779 = vmatmul.mubr.bf16.gmra.mxu0 %v2738
        %v2780 = vpop.f32.mrf.mxu0
        %v2781 = vadd.f32 0.0, %v2780
        %v2782 = vpop.f32.mrf.mxu0
        %v2783 = vadd.f32 0.0, %v2782
        %v2784 = vpop.f32.mrf.mxu0
        %v2785 = vadd.f32 0.0, %v2784
        %v2786 = vpop.f32.mrf.mxu0
        %v2787 = vadd.f32 0.0, %v2786
        %2788 = vmatprep.mubr.bf16.mxu0 %v2741
        %2789 = vmatmul.mubr.bf16.gmra.mxu0 %v2740
        %v2790 = vpop.f32.mrf.mxu0
        %v2791 = vadd.f32 0.0, %v2790
        %v2792 = vpop.f32.mrf.mxu0
        %v2793 = vadd.f32 0.0, %v2792
        %v2794 = vpop.f32.mrf.mxu0
        %v2795 = vadd.f32 0.0, %v2794
        %v2796 = vpop.f32.mrf.mxu0
        %v2797 = vadd.f32 0.0, %v2796
        %2798 = vdwg.mxu0
        %v2799 = vpack.c.bf16 %v2785, %v2781
        %v2800 = vpack.c.bf16 %v2787, %v2783
        %v2801 = vpack.c.bf16 %v2795, %v2791
        %v2802 = vpack.c.bf16 %v2797, %v2793
        %v2807 = vunpack.c.l.b16 %v2799
        %v2808 = vunpack.c.l.b16 %v2800
        %v2809 = vunpack.c.h.b16 %v2799
        %v2810 = vunpack.c.h.b16 %v2800
        %v2811 = vunpack.c.l.b16 %v2801
        %v2812 = vunpack.c.l.b16 %v2802
        %v2813 = vunpack.c.h.b16 %v2801
        %v2814 = vunpack.c.h.b16 %v2802
        %v2815 = vpack.c.b16 %v2808, %v2807
        %v2816 = vpack.c.b16 %v2810, %v2809
        %v2817 = vpack.c.b16 %v2812, %v2811
        %v2818 = vpack.c.b16 %v2814, %v2813
        %s2823 = scalar_lea.vmem [#allocation3], 8
        %2824 = vst [vmem:[%s2823] sm:$0xff] %v2815
        %2825 = vst [vmem:[%s2823 + $0x10] sm:$0xff] %v2816
        %2826 = vst [vmem:[%s2823 + $0x20] sm:$0xff] %v2817
        %2827 = vst [vmem:[%s2823 + $0x30] sm:$0xff] %v2818
        %v2828 = vld [vmem:[%s4] sm:$0xf]
        %v2829 = vld [vmem:[%s4 + $0x4] sm:$0xf]
        %v2830 = vld [vmem:[%s4 + $0x8] sm:$0xf]
        %v2831 = vld [vmem:[%s4 + $0xc] sm:$0xf]
        %v2832 = vld [vmem:[#allocation3] sm:$0xff]
        %v2833 = vld [vmem:[#allocation3 + $0x8] sm:$0xff]
        %v2834 = vld [vmem:[#allocation3 + $0x10] sm:$0xff]
        %v2835 = vld [vmem:[#allocation3 + $0x18] sm:$0xff]
        %v2836 = vld [vmem:[#allocation3 + $0x20] sm:$0xff]
        %v2837 = vld [vmem:[#allocation3 + $0x28] sm:$0xff]
        %v2838 = vld [vmem:[#allocation3 + $0x30] sm:$0xff]
        %v2839 = vld [vmem:[#allocation3 + $0x38] sm:$0xff]
        %v2840 = vld [vmem:[%s5] sm:$0xff]
        %v2841 = vld [vmem:[%s5 + $0x8] sm:$0xff]
        %v2842 = vld [vmem:[%s5 + $0x10] sm:$0xff]
        %v2843 = vld [vmem:[%s5 + $0x18] sm:$0xff]
        %2845 = vset.pattern.permute.xlu0 0
        %2846 = vperm.xlu0 %2845, %v2840
        %v2847 = vpop.permute.xlu0 %2846
        %2850 = vset.pattern.permute.xlu0 0
        %2851 = vperm.xlu0 %2850, %v2841
        %v2852 = vpop.permute.xlu0 %2851
        %2855 = vset.pattern.permute.xlu0 0
        %2856 = vperm.xlu0 %2855, %v2842
        %v2857 = vpop.permute.xlu0 %2856
        %2860 = vset.pattern.permute.xlu0 0
        %2861 = vperm.xlu0 %2860, %v2843
        %v2862 = vpop.permute.xlu0 %2861
        %v2868 = vunpack.c.l.b16 %v2828
        %v2869 = vunpack.c.l.b16 %v2829
        %v2870 = vunpack.c.l.b16 %v2830
        %v2871 = vunpack.c.l.b16 %v2831
        %v2872 = vpack.c.b16 %v2869, %v2868
        %v2873 = vpack.c.b16 %v2871, %v2870
        %v2882 = vunpack.c.l.b16 %v2832
        %v2883 = vunpack.c.h.b16 %v2832
        %v2884 = vunpack.c.l.b16 %v2833
        %v2885 = vunpack.c.h.b16 %v2833
        %v2886 = vunpack.c.l.b16 %v2834
        %v2887 = vunpack.c.h.b16 %v2834
        %v2888 = vunpack.c.l.b16 %v2835
        %v2889 = vunpack.c.h.b16 %v2835
        %v2890 = vunpack.c.l.b16 %v2836
        %v2891 = vunpack.c.h.b16 %v2836
        %v2892 = vunpack.c.l.b16 %v2837
        %v2893 = vunpack.c.h.b16 %v2837
        %v2894 = vunpack.c.l.b16 %v2838
        %v2895 = vunpack.c.h.b16 %v2838
        %v2896 = vunpack.c.l.b16 %v2839
        %v2897 = vunpack.c.h.b16 %v2839
        %v2898 = vpack.c.b16 %v2886, %v2882
        %v2899 = vpack.c.b16 %v2887, %v2883
        %v2900 = vpack.c.b16 %v2888, %v2884
        %v2901 = vpack.c.b16 %v2889, %v2885
        %v2902 = vpack.c.b16 %v2894, %v2890
        %v2903 = vpack.c.b16 %v2895, %v2891
        %v2904 = vpack.c.b16 %v2896, %v2892
        %v2905 = vpack.c.b16 %v2897, %v2893
        %v2915 = vsel %vm577, %v2872, 0
        %v2918 = vsel %vm577, %v2873, 0
        %2920 = vmatprep.subr.bf16.mxu0 0
        %2921 = vmatpush1.bf16.msra.mxu0 0
        %2922 = vmatprep.subr.bf16.mxu0 0
        %2923 = vmatpush1.bf16.msra.mxu0 0
        %2924 = vmatprep.subr.bf16.mxu0 0
        %2925 = vmatpush1.bf16.msra.mxu0 0
        %2926 = vmatprep.subr.bf16.mxu0 0
        %2927 = vmatpush1.bf16.msra.mxu0 0
        %2928 = vmatprep.subr.bf16.mxu0 0
        %2929 = vmatpush1.bf16.msra.mxu0 0
        %2930 = vmatprep.subr.bf16.mxu0 0
        %2931 = vmatpush1.bf16.msra.mxu0 0
        %2932 = vmatprep.subr.bf16.mxu0 %v2903
        %2933 = vmatpush1.bf16.msra.mxu0 %v2902
        %2934 = vmatprep.subr.bf16.mxu0 %v2899
        %2935 = vmatpush1.bf16.msra.mxu0 %v2898
        %2936 = vmatprep.subr.bf16.mxu0 0
        %2937 = vmatpush2.bf16.msra.mxu0 0
        %2938 = vmatprep.subr.bf16.mxu0 0
        %2939 = vmatpush2.bf16.msra.mxu0 0
        %2940 = vmatprep.subr.bf16.mxu0 0
        %2941 = vmatpush2.bf16.msra.mxu0 0
        %2942 = vmatprep.subr.bf16.mxu0 0
        %2943 = vmatpush2.bf16.msra.mxu0 0
        %2944 = vmatprep.subr.bf16.mxu0 0
        %2945 = vmatpush2.bf16.msra.mxu0 0
        %2946 = vmatprep.subr.bf16.mxu0 0
        %2947 = vmatpush2.bf16.msra.mxu0 0
        %2948 = vmatprep.subr.bf16.mxu0 0
        %2949 = vmatpush2.bf16.msra.mxu0 0
        %2950 = vmatprep.subr.bf16.mxu0 0
        %2951 = vmatpush2.bf16.msra.mxu0 0
        %2952 = vmatprep.mubr.bf16.mxu0 0
        %2953 = vmatmul.mubr.bf16.gmra.mxu0 %v2915
        %v2954 = vpop.f32.mrf.mxu0
        %v2955 = vadd.f32 %v2847, %v2954
        %v2956 = vpop.f32.mrf.mxu0
        %v2957 = vadd.f32 %v2847, %v2956
        %v2958 = vpop.f32.mrf.mxu0
        %v2959 = vadd.f32 %v2852, %v2958
        %v2960 = vpop.f32.mrf.mxu0
        %v2961 = vadd.f32 %v2852, %v2960
        %2962 = vmatprep.mubr.bf16.mxu0 0
        %2963 = vmatmul.mubr.bf16.gmra.mxu0 %v2918
        %v2964 = vpop.f32.mrf.mxu0
        %v2965 = vadd.f32 %v2857, %v2964
        %v2966 = vpop.f32.mrf.mxu0
        %v2967 = vadd.f32 %v2857, %v2966
        %v2968 = vpop.f32.mrf.mxu0
        %v2969 = vadd.f32 %v2862, %v2968
        %v2970 = vpop.f32.mrf.mxu0
        %v2971 = vadd.f32 %v2862, %v2970
        %2972 = vdwg.mxu0
        %2973 = vmatprep.subr.bf16.mxu0 0
        %2974 = vmatpush1.bf16.msra.mxu0 0
        %2975 = vmatprep.subr.bf16.mxu0 0
        %2976 = vmatpush1.bf16.msra.mxu0 0
        %2977 = vmatprep.subr.bf16.mxu0 0
        %2978 = vmatpush1.bf16.msra.mxu0 0
        %2979 = vmatprep.subr.bf16.mxu0 0
        %2980 = vmatpush1.bf16.msra.mxu0 0
        %2981 = vmatprep.subr.bf16.mxu0 0
        %2982 = vmatpush1.bf16.msra.mxu0 0
        %2983 = vmatprep.subr.bf16.mxu0 0
        %2984 = vmatpush1.bf16.msra.mxu0 0
        %2985 = vmatprep.subr.bf16.mxu0 %v2905
        %2986 = vmatpush1.bf16.msra.mxu0 %v2904
        %2987 = vmatprep.subr.bf16.mxu0 %v2901
        %2988 = vmatpush1.bf16.msra.mxu0 %v2900
        %2989 = vmatprep.subr.bf16.mxu0 0
        %2990 = vmatpush2.bf16.msra.mxu0 0
        %2991 = vmatprep.subr.bf16.mxu0 0
        %2992 = vmatpush2.bf16.msra.mxu0 0
        %2993 = vmatprep.subr.bf16.mxu0 0
        %2994 = vmatpush2.bf16.msra.mxu0 0
        %2995 = vmatprep.subr.bf16.mxu0 0
        %2996 = vmatpush2.bf16.msra.mxu0 0
        %2997 = vmatprep.subr.bf16.mxu0 0
        %2998 = vmatpush2.bf16.msra.mxu0 0
        %2999 = vmatprep.subr.bf16.mxu0 0
        %3000 = vmatpush2.bf16.msra.mxu0 0
        %3001 = vmatprep.subr.bf16.mxu0 0
        %3002 = vmatpush2.bf16.msra.mxu0 0
        %3003 = vmatprep.subr.bf16.mxu0 0
        %3004 = vmatpush2.bf16.msra.mxu0 0
        %3005 = vmatprep.mubr.bf16.mxu0 0
        %3006 = vmatmul.mubr.bf16.gmra.mxu0 %v2915
        %v3007 = vpop.f32.mrf.mxu0
        %v3008 = vadd.f32 %v2847, %v3007
        %v3009 = vpop.f32.mrf.mxu0
        %v3010 = vadd.f32 %v2847, %v3009
        %v3011 = vpop.f32.mrf.mxu0
        %v3012 = vadd.f32 %v2852, %v3011
        %v3013 = vpop.f32.mrf.mxu0
        %v3014 = vadd.f32 %v2852, %v3013
        %3015 = vmatprep.mubr.bf16.mxu0 0
        %3016 = vmatmul.mubr.bf16.gmra.mxu0 %v2918
        %v3017 = vpop.f32.mrf.mxu0
        %v3018 = vadd.f32 %v2857, %v3017
        %v3019 = vpop.f32.mrf.mxu0
        %v3020 = vadd.f32 %v2857, %v3019
        %v3021 = vpop.f32.mrf.mxu0
        %v3022 = vadd.f32 %v2862, %v3021
        %v3023 = vpop.f32.mrf.mxu0
        %v3024 = vadd.f32 %v2862, %v3023
        %3025 = vdwg.mxu0
        %v3026 = vadd.f32 %v2955, %v291
        %v3027 = vadd.f32 %v2957, %v292
        %v3028 = vadd.f32 %v3008, %v293
        %v3029 = vadd.f32 %v3010, %v294
        %v3030 = vadd.f32 %v2959, %v295
        %v3031 = vadd.f32 %v2961, %v296
        %v3032 = vadd.f32 %v3012, %v297
        %v3033 = vadd.f32 %v3014, %v298
        %v3034 = vadd.f32 %v2965, %v299
        %v3035 = vadd.f32 %v2967, %v300
        %v3036 = vadd.f32 %v3018, %v301
        %v3037 = vadd.f32 %v3020, %v302
        %v3038 = vadd.f32 %v2969, %v303
        %v3039 = vadd.f32 %v2971, %v304
        %v3040 = vadd.f32 %v3022, %v305
        %v3041 = vadd.f32 %v3024, %v306
        %3042 = vst [vmem:[%s287] sm:$0xff] %v3026
        %3043 = vst [vmem:[%s287 + $0x8] sm:$0xff] %v3027
        %3044 = vst [vmem:[%s287 + $0x10] sm:$0xff] %v3028
        %3045 = vst [vmem:[%s287 + $0x18] sm:$0xff] %v3029
        %3046 = vst [vmem:[%s287 + $0x20] sm:$0xff] %v3030
        %3047 = vst [vmem:[%s287 + $0x28] sm:$0xff] %v3031
        %3048 = vst [vmem:[%s287 + $0x30] sm:$0xff] %v3032
        %3049 = vst [vmem:[%s287 + $0x38] sm:$0xff] %v3033
        %3050 = vst [vmem:[%s287 + $0x40] sm:$0xff] %v3034
        %3051 = vst [vmem:[%s287 + $0x48] sm:$0xff] %v3035
        %3052 = vst [vmem:[%s287 + $0x50] sm:$0xff] %v3036
        %3053 = vst [vmem:[%s287 + $0x58] sm:$0xff] %v3037
        %3054 = vst [vmem:[%s287 + $0x60] sm:$0xff] %v3038
        %3055 = vst [vmem:[%s287 + $0x68] sm:$0xff] %v3039
        %3056 = vst [vmem:[%s287 + $0x70] sm:$0xff] %v3040
        %3057 = vst [vmem:[%s287 + $0x78] sm:$0xff] %v3041
        %s3058 = sand.u32 %s178, 1
        %s3059 = scalar_lea.sflag [#allocation6], %s3058
        %s3060 = sand.u32 %s178, 1
        %s3061 = smul.addr %s3060, 128
        %s3062 = scalar_lea.vmem [#allocation7], %s3061
        // Predicated region
        $region49: #{tpu_custom_call.1} parent=43 // pred_check
          %p3063 = pneg %p188
        $region50: #{tpu_custom_call.1} parent=43 // pred_check_branch
          %3065 = sbr.rel (%p3063) target = $region52
        $region51: #{tpu_custom_call.1} parent=43 // pred_region
          %s3066 = smul.u32 4, %s28
          %s3068 = ssub.s32 2048, 2048
          %3069 = vsyncadd %s3059, %s3068
          %s3070 = smul.addr %s27, 32
          %s3071 = sadd.s32 %s3066, %s3070
          %s3072 = smul.addr %s3071, 128
          %s3073 = scalar_lea.hbm %s6, %s3072
          %s3074 = sshll.u32 %s3062, 4
          %s3075 = int_to_ptr.vmem [resolvable:$true] %s3074
          %3080 = dma.vmem_to_hbm [thread:$0]  %s3075, 2048, %s3073, %s3059, 512, 1024, 32
        $region52: #{tpu_custom_call.1} parent=43 // pred_fallthru
          _
      $region44: #{tpu_custom_call.1} parent=5 // pred_fallthru
        _
      %p3081 = scmp.le.s32.totalorder 2, %s18
      // Predicated region
      $region53: #{tpu_custom_call.1} parent=5 // pred_check
        %p3082 = pneg %p3081
      $region54: #{tpu_custom_call.1} parent=5 // pred_check_branch
        %3084 = sbr.rel (%p3082) target = $region56
      $region55: #{tpu_custom_call.1} parent=5 // pred_region
        %s3085 = ssub.s32 %s18, 2
        // Predicated region
        $region57: #{tpu_custom_call.1} parent=55 // pred_check
          %p3086 = pneg %p194
        $region58: #{tpu_custom_call.1} parent=55 // pred_check_branch
          %3088 = sbr.rel (%p3086) target = $region60
        $region59: #{tpu_custom_call.1} parent=55 // pred_region
          %s3089 = sand.u32 %s179, 1
          %s3090 = scalar_lea.sflag [#allocation6], %s3089
          %s3091 = sand.u32 %s179, 1
          %s3092 = smul.addr %s3091, 128
          %s3093 = scalar_lea.vmem [#allocation7], %s3092
          %3094 = dma.done %s3090, 2048
        $region60: #{tpu_custom_call.1} parent=55 // pred_fallthru
          _
      $region56: #{tpu_custom_call.1} parent=5 // pred_fallthru
        _
    $region6: #{tpu_custom_call.1} parent=1 // loop_footer
      %s22 = sadd.s32 1, %s18
    $region7: #{tpu_custom_call.1} parent=1 // loop_footer_branch
      %17 = sbr.rel target = $region3
    $region8: #{tpu_custom_call.1} parent=1 // loop_exit
      _
    %3095 = vsyncpa [#allocation5], 1
    %s3096 = scalar_lea.sflag [#allocation5], 1
    %3097 = vsyncpa %s3096, 1
    %3098 = vsyncpa [#allocation6], 1
    %s3099 = scalar_lea.sflag [#allocation6], 1
    %3100 = vsyncpa %s3099, 1

</llo_original>
